<compile_context>
chip_gen: v5e
topology: v5e:2x2
jax: 0.10.0
libtpu: 0.0.40
codegen_flags: <defaults>
</compile_context>

<pallas_src>
import functools

import jax
import jax.numpy as jnp
from jax.experimental import pallas as pl
from jax.experimental.pallas import tpu as pltpu


def crystal_xas_kernel(
    feat_ref, adj_ref, prompt_ref,
    wg0_ref, wg1_ref, w0_ref, w1_ref, w2_ref, lw_ref, pw_ref, bias_ref,
    out_ref,
    atom_acc,
    *, bias_off, n_valid_out,
):
    f32 = jnp.float32
    bf16 = jnp.bfloat16
    off_bg0, off_bg1, off_b0, off_b1, off_b2, off_lb = bias_off
    G1 = wg0_ref.shape[1]
    G2 = wg1_ref.shape[1]
    M0X2 = w0_ref.shape[1]          # 2*M0 : [NormalizeNN | XANES] halves
    M1X2 = w1_ref.shape[1]          # 2*M1
    NORM = lw_ref.shape[0]
    OUT_PAD = lw_ref.shape[1]
    W2OUT = w2_ref.shape[1]         # NORM + OUT_PAD

    b = pl.program_id(0)

    # ----- per-graph GIN layers (eps=0 self term folded as +I in adj) -----
    adj = adj_ref[...]                                    # (n, n) bf16, A_g + I
    h = feat_ref[...]                                     # (n, F_PAD) bf16
    agg = jnp.dot(adj, h, preferred_element_type=f32)
    h = jnp.maximum(
        jnp.dot(agg.astype(bf16), wg0_ref[...], preferred_element_type=f32)
        + bias_ref[:, off_bg0:off_bg0 + G1], 0.0)
    agg = jnp.dot(adj, h.astype(bf16), preferred_element_type=f32)
    h = jnp.maximum(
        jnp.dot(agg.astype(bf16), wg1_ref[...], preferred_element_type=f32)
        + bias_ref[:, off_bg1:off_bg1 + G2], 0.0)

    # ----- dgl.sum_nodes for this graph -> one row of the atom matrix -----
    # Masked whole-tile select instead of a dynamic-sublane store; (B, G2) is a
    # single vreg tile so this is free on the VPU.
    @pl.when(b == 0)
    def _init():
        atom_acc[...] = jnp.zeros_like(atom_acc)

    row_ids = jax.lax.broadcasted_iota(jnp.int32, atom_acc.shape, 0)
    atom_row = jnp.sum(h, axis=0, keepdims=True)          # (1, G2)
    atom_acc[...] = jnp.where(row_ids == b, atom_row, atom_acc[...])

    # ----- MLP head: runs once, on the last grid step (all rows ready) -----
    @pl.when(b == pl.num_programs(0) - 1)
    def _head():
        atom_b = atom_acc[...].astype(bf16)               # (B, G2)
        prompt = prompt_ref[...]                          # (B, P) f32

        # prompt_nn folded through XANES[0].l0 (K = prompt_dim = 2): VPU, no MXU.
        pw = pw_ref[...]                                  # (P, 2*M0), first M0 lanes zero
        pc = prompt[:, 0:1] * pw[0:1, :]
        for j in range(1, pw_ref.shape[0]):
            pc = pc + prompt[:, j:j + 1] * pw[j:j + 1, :]

        # stage 0: fused [NormalizeNN.l0 | XANES[0].l0]  (shared atom operand)
        a0 = (jnp.dot(atom_b, w0_ref[...], preferred_element_type=f32)
              + bias_ref[:, off_b0:off_b0 + M0X2] + pc)
        a0 = jnp.maximum(a0, 0.0)
        # stage 1: block-diagonal [[nw1, 0], [0, xw1]]
        a1 = (jnp.dot(a0.astype(bf16), w1_ref[...], preferred_element_type=f32)
              + bias_ref[:, off_b1:off_b1 + M1X2])
        a1 = jnp.maximum(a1, 0.0)
        # stage 2: block-diagonal [[nw2, 0], [0, xw2_pad]]
        a2 = (jnp.dot(a1.astype(bf16), w2_ref[...], preferred_element_type=f32)
              + bias_ref[:, off_b2:off_b2 + W2OUT])

        z = a2[:, :NORM]                                  # NormalizeNN logits
        s = a2[:, NORM:]                                  # XANES[0] spectrum (lane-padded)

        # Softmax + XANES[1] Linear.
        zmax = jnp.max(z, axis=-1, keepdims=True)
        ez = jnp.exp(z - zmax)
        norm = ez * pl.reciprocal(jnp.sum(ez, axis=-1, keepdims=True), approx=True)
        nm = (jnp.dot(norm.astype(bf16), lw_ref[...], preferred_element_type=f32)
              + bias_ref[:, off_lb:off_lb + OUT_PAD])

        # unify_vector over the REAL output columns only (padding excluded).
        col = jax.lax.broadcasted_iota(jnp.int32, s.shape, 1)
        valid = col < n_valid_out
        mx = jnp.max(jnp.where(valid, s, -jnp.inf), axis=-1, keepdims=True)
        mn = jnp.min(jnp.where(valid, s, jnp.inf), axis=-1, keepdims=True)
        inv = pl.reciprocal(jnp.maximum(mx - mn, 1e-12), approx=True)   # eps guard
        out_ref[...] = (2.0 * (s - mn) * inv - 1.0) * nm


def _resident_spec(arr):
    """Full-array block with a constant index map: stays VMEM-resident across steps."""
    zeros = (0,) * arr.ndim
    return pl.BlockSpec(arr.shape, lambda b: zeros)


def crystal_xas_forward(feat_blocks, adj_blocks, prompt, params, *, out_valid, bias_off):
    """params: (wg0p, wg1, w0cat, w1blk, w2blk, lwp, pw, bias_pack) -- bf16 weights,
    f32 prompt-fold weight and packed biases; BN folded; OUT padded to 128."""
    wg0, wg1, w0cat, w1blk, w2blk, lwp, pw, bias_pack = params
    B, n_per, f_pad = feat_blocks.shape
    G2 = wg1.shape[1]
    out_pad = lwp.shape[1]

    # Advisory cost estimate (whole call).
    flops = 2 * B * (n_per * n_per * f_pad + n_per * f_pad * wg0.shape[1]
                     + n_per * n_per * wg0.shape[1] + n_per * wg0.shape[1] * G2)
    flops += 2 * B * (w0cat.shape[0] * w0cat.shape[1] + w1blk.shape[0] * w1blk.shape[1]
                      + w2blk.shape[0] * w2blk.shape[1] + lwp.shape[0] * lwp.shape[1])
    trans = B * lwp.shape[0] + 2 * B
    args = (feat_blocks, adj_blocks, prompt) + tuple(params)
    bytes_accessed = sum(a.size * a.dtype.itemsize for a in args) + B * out_pad * 4

    kernel = functools.partial(crystal_xas_kernel,
                               bias_off=bias_off, n_valid_out=out_valid)
    grid_spec = pltpu.PrefetchScalarGridSpec(
        num_scalar_prefetch=0,
        grid=(B,),
        in_specs=[
            pl.BlockSpec((None, n_per, f_pad), lambda b: (b, 0, 0)),   # feat block
            pl.BlockSpec((None, n_per, n_per), lambda b: (b, 0, 0)),   # adj block (+I)
            _resident_spec(prompt),
            _resident_spec(wg0), _resident_spec(wg1), _resident_spec(w0cat),
            _resident_spec(w1blk), _resident_spec(w2blk), _resident_spec(lwp),
            _resident_spec(pw), _resident_spec(bias_pack),
        ],
        out_specs=pl.BlockSpec((B, out_pad), lambda b: (0, 0)),
        scratch_shapes=[pltpu.VMEM((B, G2), jnp.float32)],   # atom-feature accumulator
    )
    out = pl.pallas_call(
        kernel,
        out_shape=jax.ShapeDtypeStruct((B, out_pad), jnp.float32),
        grid_spec=grid_spec,
        cost_estimate=pl.CostEstimate(flops=flops, transcendentals=trans,
                                      bytes_accessed=bytes_accessed),
        compiler_params=pltpu.CompilerParams(
            # Graph axis carries a dependency (shared scratch + last-step head).
            dimension_semantics=("arbitrary",),
            # Fits within v7x's 64 MiB physical VMEM as well as v5e/v6e's 128 MiB.
            vmem_limit_bytes=32 * 1024 * 1024,
        ),
    )(*args)
    return out[:, :out_valid]                              # drop lane padding


# -------------------------- parameter / input setup --------------------------

def _linear_init(key, fan_in, fan_out):
    """PyTorch nn.Linear default init: U(-1/sqrt(fan_in), 1/sqrt(fan_in))."""
    kw, kb = jax.random.split(key)
    bound = 1.0 / float(fan_in) ** 0.5
    w = jax.random.uniform(kw, (fan_in, fan_out), jnp.float32, -bound, bound)
    b = jax.random.uniform(kb, (1, fan_out), jnp.float32, -bound, bound)
    return w, b


def _bn_scale_shift(dim, eps=1e-5):
    """Eval-mode BatchNorm1d with fresh-init stats -> per-feature (scale, shift)."""
    gamma = jnp.ones((1, dim), jnp.float32)
    beta = jnp.zeros((1, dim), jnp.float32)
    rmean = jnp.zeros((1, dim), jnp.float32)
    rvar = jnp.ones((1, dim), jnp.float32)
    scale = gamma / jnp.sqrt(rvar + eps)
    shift = beta - rmean * scale
    return scale, shift


def _fold_bn(w, b, scale, shift):
    """Fold y = (x@w + b)*scale + shift into y = x@w' + b' (done in f32)."""
    return w * scale, b * scale + shift


def _pad_cols(w, b, out_pad):
    """Zero-pad the output dimension of a Linear to `out_pad` lanes."""
    fan_in, out = w.shape
    wp = jnp.zeros((fan_in, out_pad), jnp.float32).at[:, :out].set(w)
    bp = jnp.zeros((1, out_pad), jnp.float32).at[:, :out].set(b)
    return wp, bp


def reference_forward(feat, adj, seg, prompt, params_f32):
    """Pure-JAX f32 reference of the module forward (BN already folded)."""
    (wp, bp, wg0, bg0, wg1, bg1,
     nw0, nb0, nw1, nb1, nw2, nb2,
     xw0a, xw0b, xb0, xw1, xb1, xw2, xb2, lw, lb) = params_f32
    dot = functools.partial(jnp.dot, precision=jax.lax.Precision.HIGHEST)
    h = feat
    h = jax.nn.relu(dot(dot(adj, h) + h, wg0) + bg0)
    h = jax.nn.relu(dot(dot(adj, h) + h, wg1) + bg1)
    atom = dot(seg, h)
    pr = dot(prompt, wp) + bp
    z = jax.nn.relu(dot(atom, nw0) + nb0)
    z = jax.nn.relu(dot(z, nw1) + nb1)
    z = dot(z, nw2) + nb2
    norm = jax.nn.softmax(z, axis=-1)
    s = jax.nn.relu(dot(atom, xw0a) + dot(pr, xw0b) + xb0)
    s = jax.nn.relu(dot(s, xw1) + xb1)
    s = dot(s, xw2) + xb2
    nm = dot(norm, lw) + lb
    mx = jnp.max(s, axis=-1, keepdims=True)
    mn = jnp.min(s, axis=-1, keepdims=True)
    s = 2.0 * (s - mn) / (mx - mn) - 1.0
    return s * nm


if __name__ == "__main__":
    key = jax.random.PRNGKey(0)

    # Small shapes consistent with the module structure.
    B, n_per = 8, 8                    # 8 graphs, 8 nodes each
    N = B * n_per
    F, F_PAD = 6, 128                  # feat_dim, lane-padded feat dim
    P, H = 2, 32                       # prompt_dim, prompt_hidden_dim
    G1, G2 = 64, 128                   # gnn_hidden_dims (scaled from [128, 512])
    M0, M1 = 256, 128                  # mlp_hidden_dims (scaled from [1024, 512])
    NORM = 256                         # normnn_dim (scaled from 1024)
    OUT, OUT_PAD = 100, 128            # XANES spectrum length / lane-padded

    keys = jax.random.split(key, 16)

    # ---- graph inputs: per-graph random symmetric adjacency blocks ----
    # TODO(synk): DGL's sparse batched graph is modeled with per-graph dense
    # adjacency blocks (exact for sum aggregation over a block-diagonal graph).
    gkeys = jax.random.split(keys[0], B)
    blocks = []
    for bb in range(B):
        m = jax.random.uniform(gkeys[bb], (n_per, n_per)) < 0.4
        m = jnp.triu(m, 1)
        m = jnp.logical_or(m, m.T)
        blocks.append(m.astype(jnp.float32))
    adj_blocks = jnp.stack(blocks)                               # (B, n, n), no self loops
    adj_dense = jax.scipy.linalg.block_diag(*blocks)             # (N, N) for the reference

    seg = jnp.zeros((B, N), jnp.float32)                         # reference readout matrix
    for bb in range(B):
        seg = seg.at[bb, bb * n_per:(bb + 1) * n_per].set(1.0)

    feat = jax.random.normal(keys[1], (N, F), jnp.float32)       # graph.ndata['feat']
    prompt = jax.random.normal(keys[2], (B, P), jnp.float32)     # data['prompt']

    # ---- deterministic parameters (PyTorch-style init), BN folded in f32 ----
    wp, bp = _linear_init(keys[3], P, H)                         # prompt_nn
    wg0, bg0 = _linear_init(keys[4], F, G1)                      # GIN apply_func 0
    wg1, bg1 = _linear_init(keys[5], G1, G2)                     # GIN apply_func 1
    nw0, nb0 = _fold_bn(*_linear_init(keys[6], G2, M0), *_bn_scale_shift(M0))
    nw1, nb1 = _fold_bn(*_linear_init(keys[7], M0, M1), *_bn_scale_shift(M1))
    nw2, nb2 = _linear_init(keys[8], M1, NORM)
    xw0_full, xb0 = _fold_bn(*_linear_init(keys[9], G2 + H, M0), *_bn_scale_shift(M0))
    xw0a, xw0b = xw0_full[:G2], xw0_full[G2:]
    xw1, xb1 = _fold_bn(*_linear_init(keys[10], M0, M1), *_bn_scale_shift(M1))
    xw2, xb2 = _linear_init(keys[11], M1, OUT)
    lw, lb = _linear_init(keys[12], NORM, OUT)

    params_f32 = (wp, bp, wg0, bg0, wg1, bg1,
                  nw0, nb0, nw1, nb1, nw2, nb2,
                  xw0a, xw0b, xb0, xw1, xb1, xw2, xb2, lw, lb)

    # ---- kernel-side fused / padded / packed parameters (all folding in f32) ----
    bf16 = jnp.bfloat16
    wg0p = jnp.zeros((F_PAD, G1), jnp.float32).at[:F].set(wg0)       # match feat lane pad
    w0cat = jnp.concatenate([nw0, xw0a], axis=1)                     # (G2, 2*M0)
    pw = jnp.zeros((P, 2 * M0), jnp.float32).at[:, M0:].set(wp @ xw0b)   # prompt fold (VPU)
    pb_fold = bp @ xw0b                                              # (1, M0)
    w1blk = (jnp.zeros((2 * M0, 2 * M1), jnp.float32)
             .at[:M0, :M1].set(nw1).at[M0:, M1:].set(xw1))
    xw2p, xb2p = _pad_cols(xw2, xb2, OUT_PAD)
    w2blk = (jnp.zeros((2 * M1, NORM + OUT_PAD), jnp.float32)
             .at[:M1, :NORM].set(nw2).at[M1:, NORM:].set(xw2p))
    lwp, lbp = _pad_cols(lw, lb, OUT_PAD)

    # Packed biases: one (1, TOT) f32 array, each segment 128-lane aligned.
    ceil128 = lambda x: -(-x // 128) * 128
    off_bg0 = 0
    off_bg1 = off_bg0 + ceil128(G1)
    off_b0 = off_bg1 + ceil128(G2)
    off_b1 = off_b0 + 2 * M0
    off_b2 = off_b1 + 2 * M1
    off_lb = off_b2 + NORM + OUT_PAD
    tot = off_lb + OUT_PAD
    bias_pack = jnp.zeros((1, tot), jnp.float32)
    bias_pack = bias_pack.at[:, off_bg0:off_bg0 + G1].set(bg0)
    bias_pack = bias_pack.at[:, off_bg1:off_bg1 + G2].set(bg1)
    bias_pack = bias_pack.at[:, off_b0:off_b0 + M0].set(nb0)
    bias_pack = bias_pack.at[:, off_b0 + M0:off_b0 + 2 * M0].set(xb0 + pb_fold)
    bias_pack = bias_pack.at[:, off_b1:off_b1 + M1].set(nb1)
    bias_pack = bias_pack.at[:, off_b1 + M1:off_b1 + 2 * M1].set(xb1)
    bias_pack = bias_pack.at[:, off_b2:off_b2 + NORM].set(nb2)
    bias_pack = bias_pack.at[:, off_b2 + NORM:off_b2 + NORM + OUT_PAD].set(xb2p)
    bias_pack = bias_pack.at[:, off_lb:off_lb + OUT_PAD].set(lbp)
    bias_off = (off_bg0, off_bg1, off_b0, off_b1, off_b2, off_lb)

    params_k = (wg0p.astype(bf16), wg1.astype(bf16), w0cat.astype(bf16),
                w1blk.astype(bf16), w2blk.astype(bf16), lwp.astype(bf16),
                pw, bias_pack)

    # ---- host-side input prep: +I fold, bf16 cast, lane padding ----
    adj_blocks_i = (adj_blocks + jnp.eye(n_per, dtype=jnp.float32)[None]).astype(bf16)
    feat_blocks = jnp.zeros((B, n_per, F_PAD), jnp.float32)
    feat_blocks = feat_blocks.at[:, :, :F].set(feat.reshape(B, n_per, F)).astype(bf16)

    fwd = jax.jit(functools.partial(crystal_xas_forward,
                                    out_valid=OUT, bias_off=bias_off))
    out = fwd(feat_blocks, adj_blocks_i, prompt, params_k)
    out = jax.block_until_ready(out)

    ref = reference_forward(feat, adj_dense, seg, prompt, params_f32)
    assert out.shape == (B, OUT)
    assert bool(jnp.all(jnp.isfinite(out))), "non-finite output"
    assert jnp.allclose(out, ref, rtol=2e-2, atol=2e-2), "mismatch vs JAX reference"

    print("KERNEL_OK")
</pallas_src>

<mosaic_0001>
module attributes {stable_mosaic.version = 11 : i64} {
  func.func @crystal_xas_kernel(%arg0: i32, %arg1: memref<1x8x128xbf16, #tpu.memory_space<vmem>>, %arg2: memref<1x8x8xbf16, #tpu.memory_space<vmem>>, %arg3: memref<8x2xf32, #tpu.memory_space<vmem>>, %arg4: memref<128x64xbf16, #tpu.memory_space<vmem>>, %arg5: memref<64x128xbf16, #tpu.memory_space<vmem>>, %arg6: memref<128x512xbf16, #tpu.memory_space<vmem>>, %arg7: memref<512x256xbf16, #tpu.memory_space<vmem>>, %arg8: memref<256x384xbf16, #tpu.memory_space<vmem>>, %arg9: memref<256x128xbf16, #tpu.memory_space<vmem>>, %arg10: memref<2x512xf32, #tpu.memory_space<vmem>>, %arg11: memref<1x1536xf32, #tpu.memory_space<vmem>>, %arg12: memref<8x128xf32, #tpu.memory_space<vmem>>, %arg13: memref<8x128xf32, #tpu.memory_space<vmem>>) attributes {dimension_semantics = [#tpu.dimension_semantics<arbitrary>], iteration_bounds = array<i64: 8>, scalar_prefetch = 0 : i64, scratch_operands = 1 : i64, tpu.core_type = #tpu.core_type<tc>, window_params = [{transform_indices = @transform_0, window_bounds = array<i64: 1, 8, 128>}, {transform_indices = @transform_1, window_bounds = array<i64: 1, 8, 8>}, {pipeline_mode = #tpu.pipeline_mode<synchronous>, transform_indices = @transform_2, window_bounds = array<i64: 8, 2>}, {pipeline_mode = #tpu.pipeline_mode<synchronous>, transform_indices = @transform_3, window_bounds = array<i64: 128, 64>}, {pipeline_mode = #tpu.pipeline_mode<synchronous>, transform_indices = @transform_4, window_bounds = array<i64: 64, 128>}, {pipeline_mode = #tpu.pipeline_mode<synchronous>, transform_indices = @transform_5, window_bounds = array<i64: 128, 512>}, {pipeline_mode = #tpu.pipeline_mode<synchronous>, transform_indices = @transform_6, window_bounds = array<i64: 512, 256>}, {pipeline_mode = #tpu.pipeline_mode<synchronous>, transform_indices = @transform_7, window_bounds = array<i64: 256, 384>}, {pipeline_mode = #tpu.pipeline_mode<synchronous>, transform_indices = @transform_8, window_bounds = array<i64: 256, 128>}, {pipeline_mode = #tpu.pipeline_mode<synchronous>, transform_indices = @transform_9, window_bounds = array<i64: 2, 512>}, {pipeline_mode = #tpu.pipeline_mode<synchronous>, transform_indices = @transform_10, window_bounds = array<i64: 1, 1536>}, {pipeline_mode = #tpu.pipeline_mode<synchronous>, transform_indices = @transform_11, window_bounds = array<i64: 8, 128>}]} {
    %c0 = arith.constant 0 : index
    %c0_0 = arith.constant 0 : index
    %c0_1 = arith.constant 0 : index
    %0 = vector.load %arg2[%c0, %c0_0, %c0_1] : memref<1x8x8xbf16, #tpu.memory_space<vmem>>, vector<1x8x8xbf16>
    %1 = vector.shape_cast %0 : vector<1x8x8xbf16> to vector<8x8xbf16>
    %c0_2 = arith.constant 0 : index
    %c0_3 = arith.constant 0 : index
    %c0_4 = arith.constant 0 : index
    %2 = vector.load %arg1[%c0_2, %c0_3, %c0_4] : memref<1x8x128xbf16, #tpu.memory_space<vmem>>, vector<1x8x128xbf16>
    %3 = vector.shape_cast %2 : vector<1x8x128xbf16> to vector<8x128xbf16>
    %cst = arith.constant dense<0.000000e+00> : vector<8x128xf32>
    %4 = tpu.matmul %1, %3, %cst {dimension_numbers = #tpu.dot_dimension_numbers<[1], [0], [0], [1], [0, 0, 1, 1], [], []>} : vector<8x8xbf16>, vector<8x128xbf16>, vector<8x128xf32> -> vector<8x128xf32>
    %5 = arith.truncf %4 : vector<8x128xf32> to vector<8x128xbf16>
    %c0_5 = arith.constant 0 : index
    %c0_6 = arith.constant 0 : index
    %6 = vector.load %arg4[%c0_5, %c0_6] : memref<128x64xbf16, #tpu.memory_space<vmem>>, vector<128x64xbf16>
    %cst_7 = arith.constant dense<0.000000e+00> : vector<8x64xf32>
    %7 = tpu.matmul %5, %6, %cst_7 {dimension_numbers = #tpu.dot_dimension_numbers<[1], [0], [0], [1], [0, 0, 1, 1], [], []>} : vector<8x128xbf16>, vector<128x64xbf16>, vector<8x64xf32> -> vector<8x64xf32>
    %c0_8 = arith.constant 0 : index
    %c0_9 = arith.constant 0 : index
    %8 = vector.load %arg11[%c0_8, %c0_9] : memref<1x1536xf32, #tpu.memory_space<vmem>>, vector<1x64xf32>
    %9 = vector.broadcast %8 : vector<1x64xf32> to vector<8x64xf32>
    %10 = arith.addf %7, %9 : vector<8x64xf32>
    %cst_10 = arith.constant 0.000000e+00 : f32
    %11 = vector.broadcast %cst_10 : f32 to vector<8x64xf32>
    %12 = arith.maximumf %10, %11 : vector<8x64xf32>
    %13 = arith.truncf %12 : vector<8x64xf32> to vector<8x64xbf16>
    %cst_11 = arith.constant dense<0.000000e+00> : vector<8x64xf32>
    %14 = tpu.matmul %1, %13, %cst_11 {dimension_numbers = #tpu.dot_dimension_numbers<[1], [0], [0], [1], [0, 0, 1, 1], [], []>} : vector<8x8xbf16>, vector<8x64xbf16>, vector<8x64xf32> -> vector<8x64xf32>
    %15 = arith.truncf %14 : vector<8x64xf32> to vector<8x64xbf16>
    %c0_12 = arith.constant 0 : index
    %c0_13 = arith.constant 0 : index
    %16 = vector.load %arg5[%c0_12, %c0_13] : memref<64x128xbf16, #tpu.memory_space<vmem>>, vector<64x128xbf16>
    %cst_14 = arith.constant dense<0.000000e+00> : vector<8x128xf32>
    %17 = tpu.matmul %15, %16, %cst_14 {dimension_numbers = #tpu.dot_dimension_numbers<[1], [0], [0], [1], [0, 0, 1, 1], [], []>} : vector<8x64xbf16>, vector<64x128xbf16>, vector<8x128xf32> -> vector<8x128xf32>
    %c0_15 = arith.constant 0 : index
    %c128 = arith.constant 128 : index
    %18 = vector.load %arg11[%c0_15, %c128] : memref<1x1536xf32, #tpu.memory_space<vmem>>, vector<1x128xf32>
    %19 = vector.broadcast %18 : vector<1x128xf32> to vector<8x128xf32>
    %20 = arith.addf %17, %19 : vector<8x128xf32>
    %cst_16 = arith.constant 0.000000e+00 : f32
    %21 = vector.broadcast %cst_16 : f32 to vector<8x128xf32>
    %22 = arith.maximumf %20, %21 : vector<8x128xf32>
    %c0_i32 = arith.constant 0 : i32
    %23 = arith.cmpi eq, %arg0, %c0_i32 : i32
    %24 = arith.extui %23 : i1 to i32
    %c0_i32_17 = arith.constant 0 : i32
    %25 = arith.cmpi ne, %24, %c0_i32_17 : i32
    scf.if %25 {
      %cst_24 = arith.constant 0.000000e+00 : f32
      %39 = vector.broadcast %cst_24 : f32 to vector<8x128xf32>
      %c0_25 = arith.constant 0 : index
      %c0_26 = arith.constant 0 : index
      %40 = vector.load %arg13[%c0_25, %c0_26] : memref<8x128xf32, #tpu.memory_space<vmem>>, vector<8x128xf32>
      tpu.vector_store %arg13[%c0_25, %c0_26], %39 {strides = array<i32>} : memref<8x128xf32, #tpu.memory_space<vmem>>, vector<8x128xf32>,
    } else {
    }
    %26 = tpu.iota {dimensions = array<i32: 0>} : vector<8x128xi32>
    %cst_18 = arith.constant dense<0.000000e+00> : vector<128xf32>
    %27 = vector.multi_reduction <add>, %22, %cst_18 [0] : vector<8x128xf32> to vector<128xf32>
    %28 = vector.shape_cast %27 : vector<128xf32> to vector<1x128xf32>
    %29 = vector.broadcast %arg0 : i32 to vector<8x128xi32>
    %30 = arith.cmpi eq, %26, %29 : vector<8x128xi32>
    %c0_19 = arith.constant 0 : index
    %c0_20 = arith.constant 0 : index
    %31 = vector.load %arg13[%c0_19, %c0_20] : memref<8x128xf32, #tpu.memory_space<vmem>>, vector<8x128xf32>
    %32 = vector.shape_cast %28 : vector<1x128xf32> to vector<1x128xf32>
    %33 = vector.broadcast %32 : vector<1x128xf32> to vector<8x128xf32>
    %34 = arith.select %30, %33, %31 : vector<8x128xi1>, vector<8x128xf32>
    %c0_21 = arith.constant 0 : index
    %c0_22 = arith.constant 0 : index
    %35 = vector.load %arg13[%c0_21, %c0_22] : memref<8x128xf32, #tpu.memory_space<vmem>>, vector<8x128xf32>
    tpu.vector_store %arg13[%c0_21, %c0_22], %34 {strides = array<i32>} : memref<8x128xf32, #tpu.memory_space<vmem>>, vector<8x128xf32>,
    %c7_i32 = arith.constant 7 : i32
    %36 = arith.cmpi eq, %arg0, %c7_i32 : i32
    %37 = arith.extui %36 : i1 to i32
    %c0_i32_23 = arith.constant 0 : i32
    %38 = arith.cmpi ne, %37, %c0_i32_23 : i32
    scf.if %38 {
      %c0_24 = arith.constant 0 : index
      %c0_25 = arith.constant 0 : index
      %39 = vector.load %arg13[%c0_24, %c0_25] : memref<8x128xf32, #tpu.memory_space<vmem>>, vector<8x128xf32>
      %40 = arith.truncf %39 : vector<8x128xf32> to vector<8x128xbf16>
      %c0_26 = arith.constant 0 : index
      %c0_27 = arith.constant 0 : index
      %41 = vector.load %arg3[%c0_26, %c0_27] : memref<8x2xf32, #tpu.memory_space<vmem>>, vector<8x2xf32>
      %c0_28 = arith.constant 0 : index
      %c0_29 = arith.constant 0 : index
      %42 = vector.load %arg10[%c0_28, %c0_29] : memref<2x512xf32, #tpu.memory_space<vmem>>, vector<2x512xf32>
      %43 = vector.extract_strided_slice %41 {offsets = [0, 0], sizes = [8, 1], strides = [1, 1]} : vector<8x2xf32> to vector<8x1xf32>
      %44 = vector.extract_strided_slice %42 {offsets = [0, 0], sizes = [1, 512], strides = [1, 1]} : vector<2x512xf32> to vector<1x512xf32>
      %45 = vector.broadcast %43 : vector<8x1xf32> to vector<8x512xf32>
      %46 = vector.broadcast %44 : vector<1x512xf32> to vector<8x512xf32>
      %47 = arith.mulf %45, %46 : vector<8x512xf32>
      %48 = vector.extract_strided_slice %41 {offsets = [0, 1], sizes = [8, 1], strides = [1, 1]} : vector<8x2xf32> to vector<8x1xf32>
      %49 = vector.extract_strided_slice %42 {offsets = [1, 0], sizes = [1, 512], strides = [1, 1]} : vector<2x512xf32> to vector<1x512xf32>
      %50 = vector.broadcast %48 : vector<8x1xf32> to vector<8x512xf32>
      %51 = vector.broadcast %49 : vector<1x512xf32> to vector<8x512xf32>
      %52 = arith.mulf %50, %51 : vector<8x512xf32>
      %53 = arith.addf %47, %52 : vector<8x512xf32>
      %c0_30 = arith.constant 0 : index
      %c0_31 = arith.constant 0 : index
      %54 = vector.load %arg6[%c0_30, %c0_31] : memref<128x512xbf16, #tpu.memory_space<vmem>>, vector<128x512xbf16>
      %cst_32 = arith.constant dense<0.000000e+00> : vector<8x512xf32>
      %55 = tpu.matmul %40, %54, %cst_32 {dimension_numbers = #tpu.dot_dimension_numbers<[1], [0], [0], [1], [0, 0, 1, 1], [], []>} : vector<8x128xbf16>, vector<128x512xbf16>, vector<8x512xf32> -> vector<8x512xf32>
      %c0_33 = arith.constant 0 : index
      %c256 = arith.constant 256 : index
      %56 = vector.load %arg11[%c0_33, %c256] : memref<1x1536xf32, #tpu.memory_space<vmem>>, vector<1x512xf32>
      %57 = vector.broadcast %56 : vector<1x512xf32> to vector<8x512xf32>
      %58 = arith.addf %55, %57 : vector<8x512xf32>
      %59 = arith.addf %58, %53 : vector<8x512xf32>
      %cst_34 = arith.constant 0.000000e+00 : f32
      %60 = vector.broadcast %cst_34 : f32 to vector<8x512xf32>
      %61 = arith.maximumf %59, %60 : vector<8x512xf32>
      %62 = arith.truncf %61 : vector<8x512xf32> to vector<8x512xbf16>
      %c0_35 = arith.constant 0 : index
      %c0_36 = arith.constant 0 : index
      %63 = vector.load %arg7[%c0_35, %c0_36] : memref<512x256xbf16, #tpu.memory_space<vmem>>, vector<512x256xbf16>
      %cst_37 = arith.constant dense<0.000000e+00> : vector<8x256xf32>
      %64 = tpu.matmul %62, %63, %cst_37 {dimension_numbers = #tpu.dot_dimension_numbers<[1], [0], [0], [1], [0, 0, 1, 1], [], []>} : vector<8x512xbf16>, vector<512x256xbf16>, vector<8x256xf32> -> vector<8x256xf32>
      %c0_38 = arith.constant 0 : index
      %c768 = arith.constant 768 : index
      %65 = vector.load %arg11[%c0_38, %c768] : memref<1x1536xf32, #tpu.memory_space<vmem>>, vector<1x256xf32>
      %66 = vector.broadcast %65 : vector<1x256xf32> to vector<8x256xf32>
      %67 = arith.addf %64, %66 : vector<8x256xf32>
      %cst_39 = arith.constant 0.000000e+00 : f32
      %68 = vector.broadcast %cst_39 : f32 to vector<8x256xf32>
      %69 = arith.maximumf %67, %68 : vector<8x256xf32>
      %70 = arith.truncf %69 : vector<8x256xf32> to vector<8x256xbf16>
      %c0_40 = arith.constant 0 : index
      %c0_41 = arith.constant 0 : index
      %71 = vector.load %arg8[%c0_40, %c0_41] : memref<256x384xbf16, #tpu.memory_space<vmem>>, vector<256x384xbf16>
      %cst_42 = arith.constant dense<0.000000e+00> : vector<8x384xf32>
      %72 = tpu.matmul %70, %71, %cst_42 {dimension_numbers = #tpu.dot_dimension_numbers<[1], [0], [0], [1], [0, 0, 1, 1], [], []>} : vector<8x256xbf16>, vector<256x384xbf16>, vector<8x384xf32> -> vector<8x384xf32>
      %c0_43 = arith.constant 0 : index
      %c1024 = arith.constant 1024 : index
      %73 = vector.load %arg11[%c0_43, %c1024] : memref<1x1536xf32, #tpu.memory_space<vmem>>, vector<1x384xf32>
      %74 = vector.broadcast %73 : vector<1x384xf32> to vector<8x384xf32>
      %75 = arith.addf %72, %74 : vector<8x384xf32>
      %76 = vector.extract_strided_slice %75 {offsets = [0, 0], sizes = [8, 256], strides = [1, 1]} : vector<8x384xf32> to vector<8x256xf32>
      %77 = vector.extract_strided_slice %75 {offsets = [0, 256], sizes = [8, 128], strides = [1, 1]} : vector<8x384xf32> to vector<8x128xf32>
      %cst_44 = arith.constant dense<0xFF800000> : vector<8xf32>
      %78 = vector.multi_reduction <maximumf>, %76, %cst_44 [1] : vector<8x256xf32> to vector<8xf32>
      %79 = vector.shape_cast %78 : vector<8xf32> to vector<8x1xf32>
      %80 = vector.broadcast %79 : vector<8x1xf32> to vector<8x256xf32>
      %81 = arith.subf %76, %80 : vector<8x256xf32>
      %82 = math.exp %81 : vector<8x256xf32>
      %cst_45 = arith.constant dense<0.000000e+00> : vector<8xf32>
      %83 = vector.multi_reduction <add>, %82, %cst_45 [1] : vector<8x256xf32> to vector<8xf32>
      %84 = vector.shape_cast %83 : vector<8xf32> to vector<8x1xf32>
      %85 = tpu.reciprocal %84 {approx = true} : vector<8x1xf32> -> vector<8x1xf32>
      %86 = vector.broadcast %85 : vector<8x1xf32> to vector<8x256xf32>
      %87 = arith.mulf %82, %86 : vector<8x256xf32>
      %88 = arith.truncf %87 : vector<8x256xf32> to vector<8x256xbf16>
      %c0_46 = arith.constant 0 : index
      %c0_47 = arith.constant 0 : index
      %89 = vector.load %arg9[%c0_46, %c0_47] : memref<256x128xbf16, #tpu.memory_space<vmem>>, vector<256x128xbf16>
      %cst_48 = arith.constant dense<0.000000e+00> : vector<8x128xf32>
      %90 = tpu.matmul %88, %89, %cst_48 {dimension_numbers = #tpu.dot_dimension_numbers<[1], [0], [0], [1], [0, 0, 1, 1], [], []>} : vector<8x256xbf16>, vector<256x128xbf16>, vector<8x128xf32> -> vector<8x128xf32>
      %c0_49 = arith.constant 0 : index
      %c1408 = arith.constant 1408 : index
      %91 = vector.load %arg11[%c0_49, %c1408] : memref<1x1536xf32, #tpu.memory_space<vmem>>, vector<1x128xf32>
      %92 = vector.broadcast %91 : vector<1x128xf32> to vector<8x128xf32>
      %93 = arith.addf %90, %92 : vector<8x128xf32>
      %94 = tpu.iota {dimensions = array<i32: 1>} : vector<8x128xi32>
      %c100_i32 = arith.constant 100 : i32
      %95 = vector.broadcast %c100_i32 : i32 to vector<8x128xi32>
      %96 = arith.cmpi slt, %94, %95 : vector<8x128xi32>
      %cst_50 = arith.constant 0xFF800000 : f32
      %97 = vector.broadcast %cst_50 : f32 to vector<8x128xf32>
      %98 = arith.select %96, %77, %97 : vector<8x128xi1>, vector<8x128xf32>
      %cst_51 = arith.constant dense<0xFF800000> : vector<8xf32>
      %99 = vector.multi_reduction <maximumf>, %98, %cst_51 [1] : vector<8x128xf32> to vector<8xf32>
      %100 = vector.shape_cast %99 : vector<8xf32> to vector<8x1xf32>
      %cst_52 = arith.constant 0x7F800000 : f32
      %101 = vector.broadcast %cst_52 : f32 to vector<8x128xf32>
      %102 = arith.select %96, %77, %101 : vector<8x128xi1>, vector<8x128xf32>
      %cst_53 = arith.constant dense<0x7F800000> : vector<8xf32>
      %103 = vector.multi_reduction <minimumf>, %102, %cst_53 [1] : vector<8x128xf32> to vector<8xf32>
      %104 = vector.shape_cast %103 : vector<8xf32> to vector<8x1xf32>
      %105 = arith.subf %100, %104 : vector<8x1xf32>
      %cst_54 = arith.constant 9.99999996E-13 : f32
      %106 = vector.broadcast %cst_54 : f32 to vector<8x1xf32>
      %107 = arith.maximumf %105, %106 : vector<8x1xf32>
      %108 = tpu.reciprocal %107 {approx = true} : vector<8x1xf32> -> vector<8x1xf32>
      %109 = vector.broadcast %104 : vector<8x1xf32> to vector<8x128xf32>
      %110 = arith.subf %77, %109 : vector<8x128xf32>
      %cst_55 = arith.constant 2.000000e+00 : f32
      %111 = vector.broadcast %cst_55 : f32 to vector<8x128xf32>
      %112 = arith.mulf %111, %110 : vector<8x128xf32>
      %113 = vector.broadcast %108 : vector<8x1xf32> to vector<8x128xf32>
      %114 = arith.mulf %112, %113 : vector<8x128xf32>
      %cst_56 = arith.constant 1.000000e+00 : f32
      %115 = vector.broadcast %cst_56 : f32 to vector<8x128xf32>
      %116 = arith.subf %114, %115 : vector<8x128xf32>
      %117 = arith.mulf %116, %93 : vector<8x128xf32>
      %c0_57 = arith.constant 0 : index
      %c0_58 = arith.constant 0 : index
      %118 = vector.load %arg12[%c0_57, %c0_58] : memref<8x128xf32, #tpu.memory_space<vmem>>, vector<8x128xf32>
      tpu.vector_store %arg12[%c0_57, %c0_58], %117 {strides = array<i32>} : memref<8x128xf32, #tpu.memory_space<vmem>>, vector<8x128xf32>,
    } else {
    }
    return
  }
  func.func @transform_0(%arg0: i32) -> (i32, i32, i32) {
    %c0_i32 = arith.constant 0 : i32
    %c0_i32_0 = arith.constant 0 : i32
    %c0_i32_1 = arith.constant 0 : i32
    return %arg0, %c0_i32, %c0_i32_0 : i32, i32, i32
  }
  func.func @transform_1(%arg0: i32) -> (i32, i32, i32) {
    %c0_i32 = arith.constant 0 : i32
    %c0_i32_0 = arith.constant 0 : i32
    %c0_i32_1 = arith.constant 0 : i32
    return %arg0, %c0_i32, %c0_i32_0 : i32, i32, i32
  }
  func.func @transform_2(%arg0: i32) -> (i32, i32) {
    %c0_i32 = arith.constant 0 : i32
    %c0_i32_0 = arith.constant 0 : i32
    %c0_i32_1 = arith.constant 0 : i32
    return %c0_i32, %c0_i32_0 : i32, i32
  }
  func.func @transform_3(%arg0: i32) -> (i32, i32) {
    %c0_i32 = arith.constant 0 : i32
    %c0_i32_0 = arith.constant 0 : i32
    %c0_i32_1 = arith.constant 0 : i32
    return %c0_i32, %c0_i32_0 : i32, i32
  }
  func.func @transform_4(%arg0: i32) -> (i32, i32) {
    %c0_i32 = arith.constant 0 : i32
    %c0_i32_0 = arith.constant 0 : i32
    %c0_i32_1 = arith.constant 0 : i32
    return %c0_i32, %c0_i32_0 : i32, i32
  }
  func.func @transform_5(%arg0: i32) -> (i32, i32) {
    %c0_i32 = arith.constant 0 : i32
    %c0_i32_0 = arith.constant 0 : i32
    %c0_i32_1 = arith.constant 0 : i32
    return %c0_i32, %c0_i32_0 : i32, i32
  }
  func.func @transform_6(%arg0: i32) -> (i32, i32) {
    %c0_i32 = arith.constant 0 : i32
    %c0_i32_0 = arith.constant 0 : i32
    %c0_i32_1 = arith.constant 0 : i32
    return %c0_i32, %c0_i32_0 : i32, i32
  }
  func.func @transform_7(%arg0: i32) -> (i32, i32) {
    %c0_i32 = arith.constant 0 : i32
    %c0_i32_0 = arith.constant 0 : i32
    %c0_i32_1 = arith.constant 0 : i32
    return %c0_i32, %c0_i32_0 : i32, i32
  }
  func.func @transform_8(%arg0: i32) -> (i32, i32) {
    %c0_i32 = arith.constant 0 : i32
    %c0_i32_0 = arith.constant 0 : i32
    %c0_i32_1 = arith.constant 0 : i32
    return %c0_i32, %c0_i32_0 : i32, i32
  }
  func.func @transform_9(%arg0: i32) -> (i32, i32) {
    %c0_i32 = arith.constant 0 : i32
    %c0_i32_0 = arith.constant 0 : i32
    %c0_i32_1 = arith.constant 0 : i32
    return %c0_i32, %c0_i32_0 : i32, i32
  }
  func.func @transform_10(%arg0: i32) -> (i32, i32) {
    %c0_i32 = arith.constant 0 : i32
    %c0_i32_0 = arith.constant 0 : i32
    %c0_i32_1 = arith.constant 0 : i32
    return %c0_i32, %c0_i32_0 : i32, i32
  }
  func.func @transform_11(%arg0: i32) -> (i32, i32) {
    %c0_i32 = arith.constant 0 : i32
    %c0_i32_0 = arith.constant 0 : i32
    %c0_i32_1 = arith.constant 0 : i32
    return %c0_i32, %c0_i32_0 : i32, i32
  }
}

</mosaic_0001>

<llo_original>
// kernel: crystal_xas_forward.1
$region0: #{crystal_xas_forward.1}
  #allocation0 [shape = 'u32[]', space=smem, size = 0x4, offset = 0x4, fixed_abs, tag = 'smem constant byte address 0x4 - core index']
  #allocation1 [shape = 'u32[72,128]{1,0:T(1,128)}', space=vmem, size = 0x9000, scoped, tag = 'internal scratch']
  #allocation2 [shape = 'f32[8,128]{1,0:T(8,128)}', space=vmem, size = 0x1000, scoped, tag = 'scratch operand']
  %s0 = inlined_call_operand.vmem [shape: bf16[8,8,128], index: 0, kind: input, shape index: {}]
  %s1 = inlined_call_operand.vmem [shape: bf16[8,8,8], index: 1, kind: input, shape index: {}]
  %s2 = inlined_call_operand.vmem [shape: f32[8,2], index: 2, kind: input, shape index: {}]
  %s3 = inlined_call_operand.vmem [shape: bf16[128,64], index: 3, kind: input, shape index: {}]
  %s4 = inlined_call_operand.vmem [shape: bf16[64,128], index: 4, kind: input, shape index: {}]
  %s5 = inlined_call_operand.hbm [shape: bf16[128,512], index: 5, kind: input, shape index: {}]
  %s6 = inlined_call_operand.hbm [shape: bf16[512,256], index: 6, kind: input, shape index: {}]
  %s7 = inlined_call_operand.hbm [shape: bf16[256,384], index: 7, kind: input, shape index: {}]
  %s8 = inlined_call_operand.hbm [shape: bf16[256,128], index: 8, kind: input, shape index: {}]
  %s9 = inlined_call_operand.hbm [shape: f32[2,512], index: 9, kind: input, shape index: {}]
  %s10 = inlined_call_operand.vmem [shape: f32[1,1536], index: 10, kind: input, shape index: {}]
  %s11 = inlined_call_operand.hbm [shape: f32[8,128], index: 11, kind: output, shape index: {}]
  %s12 = sld [smem:[#allocation0]]
  $region105: #{crystal_xas_forward.1} parent=0
    _
  %s14 = ssub.s32 1, %s12
  %s15 = scalar_select 0, %s14, %s12
  $region1: #{crystal_xas_forward.1} parent=0
    #allocation3 [shape = 'u8[131072]{0}', space=vmem, size = 0x20000, scoped, tag = 'input window, operand 5, single buffered']
    #allocation4 [shape = 's32[2]{0}', space=sflag, size = 0x8, scoped, tag = 'scoped memory for crystal_xas_forward.1']
    #allocation5 [shape = 's32[2]{0}', space=sflag, size = 0x8, scoped, tag = 'scoped memory for crystal_xas_forward.1']
    #allocation6 [shape = 'u8[262144]{0}', space=vmem, size = 0x40000, scoped, tag = 'input window, operand 6, single buffered']
    #allocation7 [shape = 's32[1]{0}', space=sflag, size = 0x4, scoped, tag = 'scoped memory for crystal_xas_forward.1']
    #allocation8 [shape = 'u8[196608]{0}', space=vmem, size = 0x30000, scoped, tag = 'input window, operand 7, single buffered']
    #allocation9 [shape = 'u8[65536]{0}', space=vmem, size = 0x10000, scoped, tag = 'input window, operand 8, single buffered']
    #allocation10 [shape = 's32[1]{0}', space=sflag, size = 0x4, scoped, tag = 'scoped memory for crystal_xas_forward.1']
    #allocation11 [shape = 'u8[4096]{0}', space=vmem, size = 0x1000, scoped, tag = 'input window, operand 9, single buffered']
    #allocation12 [shape = 'u8[4096]{0}', space=vmem, size = 0x1000, scoped, tag = 'output window, operand 0, single buffered']
    %16 = vsyncpa [#allocation4], 0
    %17 = vsyncpa [#allocation7], 0
    %18 = vsyncpa [#allocation10], 0
    %19 = vsyncpa [#allocation5], 0
    loop: start=0, step=1, limit=10
    $region2: #{crystal_xas_forward.1} parent=1 // loop_pre_header
      _
    $region3: #{crystal_xas_forward.1} parent=1 // loop_header
      %s21 = sphi 0, %s25
      %p22 = scmp.ge.s32.totalorder %s21, 10
      %s31 = sphi 0, %s33
      %s34 = sphi 0, %s31
      %s35 = sphi 0, %s34
      %s51 = sphi 0, %s35
      %s57 = sphi 0, %s59
      %s60 = sphi 0, %s57
      %s61 = sphi 0, %s60
      %s77 = sphi 0, %s61
      %s81 = sphi 0, %s81
      %s83 = sphi 0, %s81
      %s84 = sphi 0, %s83
      %s98 = sphi 0, %s84
      %s102 = sphi 0, %s102
      %s104 = sphi 0, %s102
      %s105 = sphi 0, %s104
      %s119 = sphi 0, %s105
      %s123 = sphi 0, %s123
      %s125 = sphi 0, %s123
      %s126 = sphi 0, %s125
      %s140 = sphi 0, %s126
      %s144 = sphi 0, %s144
      %s146 = sphi 0, %s144
      %s147 = sphi 0, %s146
      %s161 = sphi 0, %s147
      %s165 = sphi 0, %s165
      %s167 = sphi 0, %s165
      %s168 = sphi 0, %s167
      %s182 = sphi 0, %s168
      %s186 = sphi 0, %s186
      %s188 = sphi 0, %s186
      %s189 = sphi 0, %s188
      %s203 = sphi 0, %s189
      %s207 = sphi 0, %s207
      %s209 = sphi 0, %s207
      %s210 = sphi 0, %s209
      %s224 = sphi 0, %s210
      %s228 = sphi 0, %s228
      %s230 = sphi 0, %s228
      %s231 = sphi 0, %s230
      %s245 = sphi 0, %s231
      %s249 = sphi 0, %s249
      %s251 = sphi 0, %s249
      %s252 = sphi 0, %s251
      %s266 = sphi 0, %s252
      %s270 = sphi 0, %s270
      %s272 = sphi 0, %s270
      %s273 = sphi 0, %s272
      %s287 = sphi 0, %s273
    $region4: #{crystal_xas_forward.1} parent=1 // loop_header_branch
      %24 = sbr.rel (%p22) target = $region8
    $region5: #{crystal_xas_forward.1} parent=1 // loop_body
      %s26 = ssub.s32 %s21, 1
      %s27 = ssub.s32 %s21, 2
      %s28 = sadd.s32 %s21, 1
      %s29 = ssub.s32 %s21, %s28
      %p30 = scmp.eq.s32.totalorder %s29, 0
      %s32 = sadd.s32 %s31, 1
      %s33 = scalar_select %p30, %s31, %s32
      %p36 = pneg %p30
      %p37 = scmp.eq.s32.totalorder %s21, 7
      %p38 = por %p36, %p37
      %p39 = scmp.ne.s32.totalorder %s31, %s34
      %p40 = scmp.eq.s32.totalorder %s21, 0
      %p41 = por %p39, %p40
      %p42 = scmp.ne.s32.totalorder %s31, %s34
      %p43 = scmp.eq.s32.totalorder %s26, 7
      %p44 = por %p42, %p43
      %p45 = scmp.ne.s32.totalorder %s34, %s35
      %p46 = scmp.eq.s32.totalorder %s26, 0
      %p47 = por %p45, %p46
      %p48 = scmp.ne.s32.totalorder %s34, %s35
      %p49 = scmp.eq.s32.totalorder %s27, 7
      %p50 = por %p48, %p49
      %p52 = scmp.ne.s32.totalorder %s35, %s51
      %p53 = scmp.eq.s32.totalorder %s27, 0
      %p54 = por %p52, %p53
      %s55 = ssub.s32 %s21, %s28
      %p56 = scmp.eq.s32.totalorder %s55, 0
      %s58 = sadd.s32 %s57, 1
      %s59 = scalar_select %p56, %s57, %s58
      %p62 = pneg %p56
      %p63 = scmp.eq.s32.totalorder %s21, 7
      %p64 = por %p62, %p63
      %p65 = scmp.ne.s32.totalorder %s57, %s60
      %p66 = scmp.eq.s32.totalorder %s21, 0
      %p67 = por %p65, %p66
      %p68 = scmp.ne.s32.totalorder %s57, %s60
      %p69 = scmp.eq.s32.totalorder %s26, 7
      %p70 = por %p68, %p69
      %p71 = scmp.ne.s32.totalorder %s60, %s61
      %p72 = scmp.eq.s32.totalorder %s26, 0
      %p73 = por %p71, %p72
      %p74 = scmp.ne.s32.totalorder %s60, %s61
      %p75 = scmp.eq.s32.totalorder %s27, 7
      %p76 = por %p74, %p75
      %p78 = scmp.ne.s32.totalorder %s61, %s77
      %p79 = scmp.eq.s32.totalorder %s27, 0
      %p80 = por %p78, %p79
      %s82 = sadd.s32 %s81, 1
      %p85 = scmp.eq.s32.totalorder %s21, 7
      %p86 = scmp.ne.s32.totalorder %s81, %s83
      %p87 = scmp.eq.s32.totalorder %s21, 0
      %p88 = por %p86, %p87
      %p89 = scmp.ne.s32.totalorder %s81, %s83
      %p90 = scmp.eq.s32.totalorder %s26, 7
      %p91 = por %p89, %p90
      %p92 = scmp.ne.s32.totalorder %s83, %s84
      %p93 = scmp.eq.s32.totalorder %s26, 0
      %p94 = por %p92, %p93
      %p95 = scmp.ne.s32.totalorder %s83, %s84
      %p96 = scmp.eq.s32.totalorder %s27, 7
      %p97 = por %p95, %p96
      %p99 = scmp.ne.s32.totalorder %s84, %s98
      %p100 = scmp.eq.s32.totalorder %s27, 0
      %p101 = por %p99, %p100
      %s103 = sadd.s32 %s102, 1
      %p106 = scmp.eq.s32.totalorder %s21, 7
      %p107 = scmp.ne.s32.totalorder %s102, %s104
      %p108 = scmp.eq.s32.totalorder %s21, 0
      %p109 = por %p107, %p108
      %p110 = scmp.ne.s32.totalorder %s102, %s104
      %p111 = scmp.eq.s32.totalorder %s26, 7
      %p112 = por %p110, %p111
      %p113 = scmp.ne.s32.totalorder %s104, %s105
      %p114 = scmp.eq.s32.totalorder %s26, 0
      %p115 = por %p113, %p114
      %p116 = scmp.ne.s32.totalorder %s104, %s105
      %p117 = scmp.eq.s32.totalorder %s27, 7
      %p118 = por %p116, %p117
      %p120 = scmp.ne.s32.totalorder %s105, %s119
      %p121 = scmp.eq.s32.totalorder %s27, 0
      %p122 = por %p120, %p121
      %s124 = sadd.s32 %s123, 1
      %p127 = scmp.eq.s32.totalorder %s21, 7
      %p128 = scmp.ne.s32.totalorder %s123, %s125
      %p129 = scmp.eq.s32.totalorder %s21, 0
      %p130 = por %p128, %p129
      %p131 = scmp.ne.s32.totalorder %s123, %s125
      %p132 = scmp.eq.s32.totalorder %s26, 7
      %p133 = por %p131, %p132
      %p134 = scmp.ne.s32.totalorder %s125, %s126
      %p135 = scmp.eq.s32.totalorder %s26, 0
      %p136 = por %p134, %p135
      %p137 = scmp.ne.s32.totalorder %s125, %s126
      %p138 = scmp.eq.s32.totalorder %s27, 7
      %p139 = por %p137, %p138
      %p141 = scmp.ne.s32.totalorder %s126, %s140
      %p142 = scmp.eq.s32.totalorder %s27, 0
      %p143 = por %p141, %p142
      %s145 = sadd.s32 %s144, 1
      %p148 = scmp.eq.s32.totalorder %s21, 7
      %p149 = scmp.ne.s32.totalorder %s144, %s146
      %p150 = scmp.eq.s32.totalorder %s21, 0
      %p151 = por %p149, %p150
      %p152 = scmp.ne.s32.totalorder %s144, %s146
      %p153 = scmp.eq.s32.totalorder %s26, 7
      %p154 = por %p152, %p153
      %p155 = scmp.ne.s32.totalorder %s146, %s147
      %p156 = scmp.eq.s32.totalorder %s26, 0
      %p157 = por %p155, %p156
      %p158 = scmp.ne.s32.totalorder %s146, %s147
      %p159 = scmp.eq.s32.totalorder %s27, 7
      %p160 = por %p158, %p159
      %p162 = scmp.ne.s32.totalorder %s147, %s161
      %p163 = scmp.eq.s32.totalorder %s27, 0
      %p164 = por %p162, %p163
      %s166 = sadd.s32 %s165, 1
      %p169 = scmp.eq.s32.totalorder %s21, 7
      %p170 = scmp.ne.s32.totalorder %s165, %s167
      %p171 = scmp.eq.s32.totalorder %s21, 0
      %p172 = por %p170, %p171
      %p173 = scmp.ne.s32.totalorder %s165, %s167
      %p174 = scmp.eq.s32.totalorder %s26, 7
      %p175 = por %p173, %p174
      %p176 = scmp.ne.s32.totalorder %s167, %s168
      %p177 = scmp.eq.s32.totalorder %s26, 0
      %p178 = por %p176, %p177
      %p179 = scmp.ne.s32.totalorder %s167, %s168
      %p180 = scmp.eq.s32.totalorder %s27, 7
      %p181 = por %p179, %p180
      %p183 = scmp.ne.s32.totalorder %s168, %s182
      %p184 = scmp.eq.s32.totalorder %s27, 0
      %p185 = por %p183, %p184
      %s187 = sadd.s32 %s186, 1
      %p190 = scmp.eq.s32.totalorder %s21, 7
      %p191 = scmp.ne.s32.totalorder %s186, %s188
      %p192 = scmp.eq.s32.totalorder %s21, 0
      %p193 = por %p191, %p192
      %p194 = scmp.ne.s32.totalorder %s186, %s188
      %p195 = scmp.eq.s32.totalorder %s26, 7
      %p196 = por %p194, %p195
      %p197 = scmp.ne.s32.totalorder %s188, %s189
      %p198 = scmp.eq.s32.totalorder %s26, 0
      %p199 = por %p197, %p198
      %p200 = scmp.ne.s32.totalorder %s188, %s189
      %p201 = scmp.eq.s32.totalorder %s27, 7
      %p202 = por %p200, %p201
      %p204 = scmp.ne.s32.totalorder %s189, %s203
      %p205 = scmp.eq.s32.totalorder %s27, 0
      %p206 = por %p204, %p205
      %s208 = sadd.s32 %s207, 1
      %p211 = scmp.eq.s32.totalorder %s21, 7
      %p212 = scmp.ne.s32.totalorder %s207, %s209
      %p213 = scmp.eq.s32.totalorder %s21, 0
      %p214 = por %p212, %p213
      %p215 = scmp.ne.s32.totalorder %s207, %s209
      %p216 = scmp.eq.s32.totalorder %s26, 7
      %p217 = por %p215, %p216
      %p218 = scmp.ne.s32.totalorder %s209, %s210
      %p219 = scmp.eq.s32.totalorder %s26, 0
      %p220 = por %p218, %p219
      %p221 = scmp.ne.s32.totalorder %s209, %s210
      %p222 = scmp.eq.s32.totalorder %s27, 7
      %p223 = por %p221, %p222
      %p225 = scmp.ne.s32.totalorder %s210, %s224
      %p226 = scmp.eq.s32.totalorder %s27, 0
      %p227 = por %p225, %p226
      %s229 = sadd.s32 %s228, 1
      %p232 = scmp.eq.s32.totalorder %s21, 7
      %p233 = scmp.ne.s32.totalorder %s228, %s230
      %p234 = scmp.eq.s32.totalorder %s21, 0
      %p235 = por %p233, %p234
      %p236 = scmp.ne.s32.totalorder %s228, %s230
      %p237 = scmp.eq.s32.totalorder %s26, 7
      %p238 = por %p236, %p237
      %p239 = scmp.ne.s32.totalorder %s230, %s231
      %p240 = scmp.eq.s32.totalorder %s26, 0
      %p241 = por %p239, %p240
      %p242 = scmp.ne.s32.totalorder %s230, %s231
      %p243 = scmp.eq.s32.totalorder %s27, 7
      %p244 = por %p242, %p243
      %p246 = scmp.ne.s32.totalorder %s231, %s245
      %p247 = scmp.eq.s32.totalorder %s27, 0
      %p248 = por %p246, %p247
      %s250 = sadd.s32 %s249, 1
      %p253 = scmp.eq.s32.totalorder %s21, 7
      %p254 = scmp.ne.s32.totalorder %s249, %s251
      %p255 = scmp.eq.s32.totalorder %s21, 0
      %p256 = por %p254, %p255
      %p257 = scmp.ne.s32.totalorder %s249, %s251
      %p258 = scmp.eq.s32.totalorder %s26, 7
      %p259 = por %p257, %p258
      %p260 = scmp.ne.s32.totalorder %s251, %s252
      %p261 = scmp.eq.s32.totalorder %s26, 0
      %p262 = por %p260, %p261
      %p263 = scmp.ne.s32.totalorder %s251, %s252
      %p264 = scmp.eq.s32.totalorder %s27, 7
      %p265 = por %p263, %p264
      %p267 = scmp.ne.s32.totalorder %s252, %s266
      %p268 = scmp.eq.s32.totalorder %s27, 0
      %p269 = por %p267, %p268
      %s271 = sadd.s32 %s270, 1
      %p274 = scmp.eq.s32.totalorder %s21, 7
      %p275 = scmp.ne.s32.totalorder %s270, %s272
      %p276 = scmp.eq.s32.totalorder %s21, 0
      %p277 = por %p275, %p276
      %p278 = scmp.ne.s32.totalorder %s270, %s272
      %p279 = scmp.eq.s32.totalorder %s26, 7
      %p280 = por %p278, %p279
      %p281 = scmp.ne.s32.totalorder %s272, %s273
      %p282 = scmp.eq.s32.totalorder %s26, 0
      %p283 = por %p281, %p282
      %p284 = scmp.ne.s32.totalorder %s272, %s273
      %p285 = scmp.eq.s32.totalorder %s27, 7
      %p286 = por %p284, %p285
      %p288 = scmp.ne.s32.totalorder %s273, %s287
      %p289 = scmp.eq.s32.totalorder %s27, 0
      %p290 = por %p288, %p289
      %p291 = scmp.le.s32.totalorder 1, %s21
      %p292 = scmp.lt.s32.totalorder %s21, 9
      %p293 = pnand %p291, %p292
      %p294 = pneg %p293
      // Predicated region
      $region9: #{crystal_xas_forward.1} parent=5 // pred_check
        _
      $region10: #{crystal_xas_forward.1} parent=5 // pred_check_branch
        %296 = sbr.rel (%p293) target = $region12
      $region11: #{crystal_xas_forward.1} parent=5 // pred_region
        %s297 = ssub.s32 %s21, 1
        // Predicated region
        $region13: #{crystal_xas_forward.1} parent=11 // pred_check
          %p298 = pneg %p94
        $region14: #{crystal_xas_forward.1} parent=11 // pred_check_branch
          %300 = sbr.rel (%p298) target = $region16
        $region15: #{crystal_xas_forward.1} parent=11 // pred_region
          _
        $region16: #{crystal_xas_forward.1} parent=11 // pred_fallthru
          _
        // Predicated region
        $region17: #{crystal_xas_forward.1} parent=11 // pred_check
          %p301 = pneg %p115
        $region18: #{crystal_xas_forward.1} parent=11 // pred_check_branch
          %303 = sbr.rel (%p301) target = $region20
        $region19: #{crystal_xas_forward.1} parent=11 // pred_region
          _
        $region20: #{crystal_xas_forward.1} parent=11 // pred_fallthru
          _
        // Predicated region
        $region21: #{crystal_xas_forward.1} parent=11 // pred_check
          %p304 = pneg %p136
        $region22: #{crystal_xas_forward.1} parent=11 // pred_check_branch
          %306 = sbr.rel (%p304) target = $region24
        $region23: #{crystal_xas_forward.1} parent=11 // pred_region
          _
        $region24: #{crystal_xas_forward.1} parent=11 // pred_fallthru
          _
        // Predicated region
        $region25: #{crystal_xas_forward.1} parent=11 // pred_check
          %p307 = pneg %p157
        $region26: #{crystal_xas_forward.1} parent=11 // pred_check_branch
          %309 = sbr.rel (%p307) target = $region28
        $region27: #{crystal_xas_forward.1} parent=11 // pred_region
          %311 = vsyncadd [#allocation4], 0
          %s312 = sshll.u32 %s5, 4
          %s313 = int_to_ptr.hbm [resolvable:$true] %s312
          %s314 = sshll.u32 [#allocation3], 4
          %s315 = int_to_ptr.vmem [resolvable:$true] %s314
          %320 = dma.hbm_to_vmem [thread:$0]  %s313, 4096, %s315, [#allocation4], 256, 256, 16
        $region28: #{crystal_xas_forward.1} parent=11 // pred_fallthru
          _
        // Predicated region
        $region29: #{crystal_xas_forward.1} parent=11 // pred_check
          %p321 = pneg %p178
        $region30: #{crystal_xas_forward.1} parent=11 // pred_check_branch
          %323 = sbr.rel (%p321) target = $region32
        $region31: #{crystal_xas_forward.1} parent=11 // pred_region
          %325 = vsyncadd [#allocation7], 0
          %s326 = sshll.u32 %s6, 4
          %s327 = int_to_ptr.hbm [resolvable:$true] %s326
          %s328 = sshll.u32 [#allocation6], 4
          %s329 = int_to_ptr.vmem [resolvable:$true] %s328
          %334 = dma.hbm_to_vmem [thread:$0]  %s327, 8192, %s329, [#allocation7], 128, 128, 8
        $region32: #{crystal_xas_forward.1} parent=11 // pred_fallthru
          _
        // Predicated region
        $region33: #{crystal_xas_forward.1} parent=11 // pred_check
          %p335 = pneg %p199
        $region34: #{crystal_xas_forward.1} parent=11 // pred_check_branch
          %337 = sbr.rel (%p335) target = $region36
        $region35: #{crystal_xas_forward.1} parent=11 // pred_region
          %339 = vsyncadd [#allocation7], 0
          %s340 = sshll.u32 %s7, 4
          %s341 = int_to_ptr.hbm [resolvable:$true] %s340
          %s342 = sshll.u32 [#allocation8], 4
          %s343 = int_to_ptr.vmem [resolvable:$true] %s342
          %348 = dma.hbm_to_vmem [thread:$0]  %s341, 6144, %s343, [#allocation7], 192, 192, 12
        $region36: #{crystal_xas_forward.1} parent=11 // pred_fallthru
          _
        // Predicated region
        $region37: #{crystal_xas_forward.1} parent=11 // pred_check
          %p349 = pneg %p220
        $region38: #{crystal_xas_forward.1} parent=11 // pred_check_branch
          %351 = sbr.rel (%p349) target = $region40
        $region39: #{crystal_xas_forward.1} parent=11 // pred_region
          %353 = vsyncadd [#allocation10], 0
          %s354 = sshll.u32 %s8, 4
          %s355 = int_to_ptr.hbm [resolvable:$true] %s354
          %s356 = sshll.u32 [#allocation9], 4
          %s357 = int_to_ptr.vmem [resolvable:$true] %s356
          %362 = dma.hbm_to_vmem [thread:$0]  %s355, 2048, %s357, [#allocation10], 64, 64, 4
        $region40: #{crystal_xas_forward.1} parent=11 // pred_fallthru
          _
        // Predicated region
        $region41: #{crystal_xas_forward.1} parent=11 // pred_check
          %p363 = pneg %p241
        $region42: #{crystal_xas_forward.1} parent=11 // pred_check_branch
          %365 = sbr.rel (%p363) target = $region44
        $region43: #{crystal_xas_forward.1} parent=11 // pred_region
          %367 = vsyncadd [#allocation10], 0
          %s369 = sshll.u32 %s9, 4
          %s370 = int_to_ptr.hbm [resolvable:$true] %s369
          %s371 = sshll.u32 [#allocation11], 4
          %s372 = int_to_ptr.vmem [resolvable:$true] %s371
          %374 = dma.hbm_to_vmem [thread:$0]  %s370, 128, %s372, [#allocation10]
        $region44: #{crystal_xas_forward.1} parent=11 // pred_fallthru
          _
        // Predicated region
        $region45: #{crystal_xas_forward.1} parent=11 // pred_check
          %p375 = pneg %p262
        $region46: #{crystal_xas_forward.1} parent=11 // pred_check_branch
          %377 = sbr.rel (%p375) target = $region48
        $region47: #{crystal_xas_forward.1} parent=11 // pred_region
          _
        $region48: #{crystal_xas_forward.1} parent=11 // pred_fallthru
          _
      $region12: #{crystal_xas_forward.1} parent=5 // pred_fallthru
        _
      %p378 = scmp.lt.s32.totalorder %s21, 8
      // Predicated region
      $region49: #{crystal_xas_forward.1} parent=5 // pred_check
        %p379 = pneg %p378
      $region50: #{crystal_xas_forward.1} parent=5 // pred_check_branch
        %381 = sbr.rel (%p379) target = $region52
      $region51: #{crystal_xas_forward.1} parent=5 // pred_region
        // Predicated region
        $region53: #{crystal_xas_forward.1} parent=51 // pred_check
          %p382 = pneg %p41
        $region54: #{crystal_xas_forward.1} parent=51 // pred_check_branch
          %384 = sbr.rel (%p382) target = $region56
        $region55: #{crystal_xas_forward.1} parent=51 // pred_region
          %p385 = scmp.lt.s32.totalorder %s21, 7
          %s386 = scalar_select %p385, %s21, 7
          %s387 = smul.addr %s386, 4
          %s388 = scalar_lea.vmem %s0, %s387
        $region56: #{crystal_xas_forward.1} parent=51 // pred_fallthru
          _
        // Predicated region
        $region57: #{crystal_xas_forward.1} parent=51 // pred_check
          %p389 = pneg %p67
        $region58: #{crystal_xas_forward.1} parent=51 // pred_check_branch
          %391 = sbr.rel (%p389) target = $region60
        $region59: #{crystal_xas_forward.1} parent=51 // pred_region
          %p392 = scmp.lt.s32.totalorder %s21, 7
          %s393 = scalar_select %p392, %s21, 7
          %s394 = smul.addr %s393, 4
          %s395 = scalar_lea.vmem %s1, %s394
        $region60: #{crystal_xas_forward.1} parent=51 // pred_fallthru
          _
      $region52: #{crystal_xas_forward.1} parent=5 // pred_fallthru
        _
      %p396 = scmp.le.s32.totalorder 1, %s21
      %p397 = scmp.lt.s32.totalorder %s21, 9
      %p398 = pnand %p396, %p397
      %p399 = pneg %p398
      // Predicated region
      $region61: #{crystal_xas_forward.1} parent=5 // pred_check
        _
      $region62: #{crystal_xas_forward.1} parent=5 // pred_check_branch
        %401 = sbr.rel (%p398) target = $region64
      $region63: #{crystal_xas_forward.1} parent=5 // pred_region
        %s402 = ssub.s32 %s21, 1
        // Predicated region
        $region65: #{crystal_xas_forward.1} parent=63 // pred_check
          %p403 = pneg %p157
        $region66: #{crystal_xas_forward.1} parent=63 // pred_check_branch
          %405 = sbr.rel (%p403) target = $region68
        $region67: #{crystal_xas_forward.1} parent=63 // pred_region
          %407 = dma.done [#allocation4], 4096
        $region68: #{crystal_xas_forward.1} parent=63 // pred_fallthru
          _
        // Predicated region
        $region69: #{crystal_xas_forward.1} parent=63 // pred_check
          %p408 = pneg %p178
        $region70: #{crystal_xas_forward.1} parent=63 // pred_check_branch
          %410 = sbr.rel (%p408) target = $region72
        $region71: #{crystal_xas_forward.1} parent=63 // pred_region
          %412 = dma.done [#allocation7], 8192
        $region72: #{crystal_xas_forward.1} parent=63 // pred_fallthru
          _
        // Predicated region
        $region73: #{crystal_xas_forward.1} parent=63 // pred_check
          %p413 = pneg %p199
        $region74: #{crystal_xas_forward.1} parent=63 // pred_check_branch
          %415 = sbr.rel (%p413) target = $region76
        $region75: #{crystal_xas_forward.1} parent=63 // pred_region
          %417 = dma.done [#allocation7], 6144
        $region76: #{crystal_xas_forward.1} parent=63 // pred_fallthru
          _
        // Predicated region
        $region77: #{crystal_xas_forward.1} parent=63 // pred_check
          %p418 = pneg %p220
        $region78: #{crystal_xas_forward.1} parent=63 // pred_check_branch
          %420 = sbr.rel (%p418) target = $region80
        $region79: #{crystal_xas_forward.1} parent=63 // pred_region
          %422 = dma.done [#allocation10], 2048
        $region80: #{crystal_xas_forward.1} parent=63 // pred_fallthru
          _
        // Predicated region
        $region81: #{crystal_xas_forward.1} parent=63 // pred_check
          %p423 = pneg %p241
        $region82: #{crystal_xas_forward.1} parent=63 // pred_check_branch
          %425 = sbr.rel (%p423) target = $region84
        $region83: #{crystal_xas_forward.1} parent=63 // pred_region
          %427 = dma.done [#allocation10], 128
        $region84: #{crystal_xas_forward.1} parent=63 // pred_fallthru
          _
        %p428 = scmp.lt.s32.totalorder %s26, 7
        %s429 = scalar_select %p428, %s26, 7
        %s430 = smul.addr %s429, 4
        %s431 = scalar_lea.vmem %s0, %s430
        %p432 = pneg %p47
        %p433 = pneg %p44
        %p434 = scmp.lt.s32.totalorder %s26, 7
        %s435 = scalar_select %p434, %s26, 7
        %s436 = smul.addr %s435, 4
        %s437 = scalar_lea.vmem %s1, %s436
        %p438 = pneg %p73
        %p439 = pneg %p70
        %p440 = pneg %p94
        %p441 = pneg %p91
        %p442 = pneg %p115
        %p443 = pneg %p112
        %p444 = pneg %p136
        %p445 = pneg %p133
        %p446 = pneg %p157
        %p447 = pneg %p154
        %p448 = pneg %p178
        %p449 = pneg %p175
        %p450 = pneg %p199
        %p451 = pneg %p196
        %p452 = pneg %p220
        %p453 = pneg %p217
        %p454 = pneg %p241
        %p455 = pneg %p238
        %p456 = pneg %p262
        %p457 = pneg %p259
        %p458 = pneg %p283
        %p459 = pneg %p280
        %p460 = scmp.lt.s32.totalorder %s26, 7
        %s461 = scalar_select %p460, %s26, 7
        %s462 = smul.addr %s461, 4
        %s463 = scalar_lea.vmem %s0, %s462
        %p464 = scmp.lt.s32.totalorder %s26, 7
        %s465 = scalar_select %p464, %s26, 7
        %s466 = smul.addr %s465, 4
        %s467 = scalar_lea.vmem %s1, %s466
        %v469 = vld [vmem:[%s467] sm:$0xf]
        %v470 = vld [vmem:[%s463] sm:$0xf]
        %vm471 = vcmask 64512
        %v473 = vsel %vm471, %v469, 0
        %vm475 = vcmask 1043456
        %v477 = vsel %vm475, %v470, 0
        %479 = vmatpush.bf16.msra.mxu0 0
        %480 = vmatpush.bf16.msra.mxu0 0
        %481 = vmatpush.bf16.msra.mxu0 0
        %482 = vmatpush.bf16.msra.mxu0 0
        %483 = vmatpush.bf16.msra.mxu0 0
        %484 = vmatpush.bf16.msra.mxu0 0
        %485 = vmatpush.bf16.msra.mxu0 0
        %486 = vmatpush.bf16.msra.mxu0 %v477
        %487 = vmatmul.bf16.gmra.mxu0 %v473
        %v488 = vpop.f32.mrf.mxu0
        %v489 = vadd.f32 0.0, %v488
        %v490 = vpop.f32.mrf.mxu0
        %491 = vdwg.mxu0
        %v492 = vpack.c.bf16 %v489, %v489
        %v493 = vld [vmem:[%s3] sm:$0xf]
        %v494 = vld [vmem:[%s3 + $0x4] sm:$0xf]
        %v495 = vld [vmem:[%s3 + $0x8] sm:$0xf]
        %v496 = vld [vmem:[%s3 + $0xc] sm:$0xf]
        %v497 = vld [vmem:[%s3 + $0x10] sm:$0xf]
        %v498 = vld [vmem:[%s3 + $0x14] sm:$0xf]
        %v499 = vld [vmem:[%s3 + $0x18] sm:$0xf]
        %v500 = vld [vmem:[%s3 + $0x1c] sm:$0xf]
        %v501 = vld [vmem:[%s3 + $0x20] sm:$0xf]
        %v502 = vld [vmem:[%s3 + $0x24] sm:$0xf]
        %v503 = vld [vmem:[%s3 + $0x28] sm:$0xf]
        %v504 = vld [vmem:[%s3 + $0x2c] sm:$0xf]
        %v505 = vld [vmem:[%s3 + $0x30] sm:$0xf]
        %v506 = vld [vmem:[%s3 + $0x34] sm:$0xf]
        %v507 = vld [vmem:[%s3 + $0x38] sm:$0xf]
        %v508 = vld [vmem:[%s3 + $0x3c] sm:$0xf]
        %v509 = vld [vmem:[%s10] sm:$0x1]
        %v511 = vperm.slane %v509, 0
        %v529 = vunpack.c.l.b16 %v493
        %v530 = vunpack.c.l.b16 %v494
        %v531 = vunpack.c.l.b16 %v495
        %v532 = vunpack.c.l.b16 %v496
        %v533 = vunpack.c.l.b16 %v497
        %v534 = vunpack.c.l.b16 %v498
        %v535 = vunpack.c.l.b16 %v499
        %v536 = vunpack.c.l.b16 %v500
        %v537 = vunpack.c.l.b16 %v501
        %v538 = vunpack.c.l.b16 %v502
        %v539 = vunpack.c.l.b16 %v503
        %v540 = vunpack.c.l.b16 %v504
        %v541 = vunpack.c.l.b16 %v505
        %v542 = vunpack.c.l.b16 %v506
        %v543 = vunpack.c.l.b16 %v507
        %v544 = vunpack.c.l.b16 %v508
        %v545 = vpack.c.b16 %v530, %v529
        %v546 = vpack.c.b16 %v532, %v531
        %v547 = vpack.c.b16 %v534, %v533
        %v548 = vpack.c.b16 %v536, %v535
        %v549 = vpack.c.b16 %v538, %v537
        %v550 = vpack.c.b16 %v540, %v539
        %v551 = vpack.c.b16 %v542, %v541
        %v552 = vpack.c.b16 %v544, %v543
        %561 = vmatpush.bf16.msra.mxu0 %v552
        %562 = vmatpush.bf16.msra.mxu0 %v551
        %563 = vmatpush.bf16.msra.mxu0 %v550
        %564 = vmatpush.bf16.msra.mxu0 %v549
        %565 = vmatpush.bf16.msra.mxu0 %v548
        %566 = vmatpush.bf16.msra.mxu0 %v547
        %567 = vmatpush.bf16.msra.mxu0 %v546
        %568 = vmatpush.bf16.msra.mxu0 %v545
        %569 = vmatmul.bf16.gmra.mxu0 %v492
        %v570 = vpop.f32.mrf.mxu0
        %v571 = vadd.f32 %v511, %v570
        %v572 = vpop.f32.mrf.mxu0
        %573 = vdwg.mxu0
        %v574 = vmax.f32 %v571, 0.0
        %v575 = vpack.c.bf16 %v574, %v574
        %v577 = vsel %vm475, %v575, 0
        %579 = vmatpush.bf16.msra.mxu0 0
        %580 = vmatpush.bf16.msra.mxu0 0
        %581 = vmatpush.bf16.msra.mxu0 0
        %582 = vmatpush.bf16.msra.mxu0 0
        %583 = vmatpush.bf16.msra.mxu0 0
        %584 = vmatpush.bf16.msra.mxu0 0
        %585 = vmatpush.bf16.msra.mxu0 0
        %586 = vmatpush.bf16.msra.mxu0 %v577
        %587 = vmatmul.bf16.gmra.mxu0 %v473
        %v588 = vpop.f32.mrf.mxu0
        %v589 = vadd.f32 0.0, %v588
        %v590 = vpop.f32.mrf.mxu0
        %591 = vdwg.mxu0
        %v592 = vpack.c.bf16 %v589, %v589
        %v593 = vld [vmem:[%s4] sm:$0xf]
        %v594 = vld [vmem:[%s4 + $0x4] sm:$0xf]
        %v595 = vld [vmem:[%s4 + $0x8] sm:$0xf]
        %v596 = vld [vmem:[%s4 + $0xc] sm:$0xf]
        %v597 = vld [vmem:[%s4 + $0x10] sm:$0xf]
        %v598 = vld [vmem:[%s4 + $0x14] sm:$0xf]
        %v599 = vld [vmem:[%s4 + $0x18] sm:$0xf]
        %v600 = vld [vmem:[%s4 + $0x1c] sm:$0xf]
        %v601 = vld [vmem:[%s10 + $0x1] sm:$0x1]
        %v603 = vperm.slane %v601, 0
        %v613 = vunpack.c.l.b16 %v593
        %v614 = vunpack.c.l.b16 %v594
        %v615 = vunpack.c.l.b16 %v595
        %v616 = vunpack.c.l.b16 %v596
        %v617 = vunpack.c.l.b16 %v597
        %v618 = vunpack.c.l.b16 %v598
        %v619 = vunpack.c.l.b16 %v599
        %v620 = vunpack.c.l.b16 %v600
        %v621 = vpack.c.b16 %v614, %v613
        %v622 = vpack.c.b16 %v616, %v615
        %v623 = vpack.c.b16 %v618, %v617
        %v624 = vpack.c.b16 %v620, %v619
        %vm629 = vcmask 523264
        %v631 = vsel %vm629, %v592, 0
        %633 = vmatpush.bf16.msra.mxu0 0
        %634 = vmatpush.bf16.msra.mxu0 0
        %635 = vmatpush.bf16.msra.mxu0 0
        %636 = vmatpush.bf16.msra.mxu0 0
        %637 = vmatpush.bf16.msra.mxu0 %v624
        %638 = vmatpush.bf16.msra.mxu0 %v623
        %639 = vmatpush.bf16.msra.mxu0 %v622
        %640 = vmatpush.bf16.msra.mxu0 %v621
        %641 = vmatmul.bf16.gmra.mxu0 %v631
        %v642 = vpop.f32.mrf.mxu0
        %v643 = vadd.f32 %v603, %v642
        %v644 = vpop.f32.mrf.mxu0
        %645 = vdwg.mxu0
        %v646 = vmax.f32 %v643, 0.0
        %p647 = scmp.eq.s32.totalorder %s26, 0
        // Predicated region
        $region85: #{crystal_xas_forward.1} parent=63 // pred_check
          %p648 = pneg %p647
        $region86: #{crystal_xas_forward.1} parent=63 // pred_check_branch
          %650 = sbr.rel (%p648) target = $region88
        $region87: #{crystal_xas_forward.1} parent=63 // pred_region
          %651 = vst [vmem:[#allocation2] sm:$0xff] 0.0
        $region88: #{crystal_xas_forward.1} parent=63 // pred_fallthru
          _
        %v652 = vlaneseq
        %v653 = vshrl.u32 %v652, 7
        %v654 = vrot.slane %v646, 4
        %v655 = vadd.f32 %v646, %v654
        %v656 = vrot.slane %v655, 2
        %v657 = vadd.f32 %v655, %v656
        %v658 = vrot.slane %v657, 1
        %v659 = vadd.f32 %v657, %v658
        %v660 = vstv %s26
        %vm661 = vcmp.eq.s32.totalorder %v653, %v660
        %v662 = vld [vmem:[#allocation2] sm:$0xff]
        %v663 = vsel %vm661, %v659, %v662
        %664 = vst [vmem:[#allocation2] sm:$0xff] %v663
        %p665 = scmp.eq.s32.totalorder %s26, 7
        // Predicated region
        $region89: #{crystal_xas_forward.1} parent=63 // pred_check
          %p666 = pneg %p665
        $region90: #{crystal_xas_forward.1} parent=63 // pred_check_branch
          %668 = sbr.rel (%p666) target = $region92
        $region91: #{crystal_xas_forward.1} parent=63 // pred_region
          %v669 = vld [vmem:[#allocation2] sm:$0xff]
          %v670 = vpack.c.bf16 %v669, %v669
          %v671 = vld [vmem:[%s2] sm:$0xff]
          %v672 = vld [vmem:[#allocation11] sm:$0xff]
          %674 = vset.pattern.permute.xlu0 0
          %675 = vperm.xlu0 %674, %v671
          %v676 = vpop.permute.xlu0 %675
          %v679 = vperm.slane %v672, 0
          %v680 = vperm.slane %v672, 2
          %v681 = vperm.slane %v672, 4
          %v682 = vperm.slane %v672, 6
          %v687 = vperm.slane %v679, 0
          %v688 = vperm.slane %v680, 0
          %v689 = vperm.slane %v681, 0
          %v690 = vperm.slane %v682, 0
          %v691 = vmul.f32 %v676, %v687
          %v692 = vmul.f32 %v676, %v688
          %v693 = vmul.f32 %v676, %v689
          %v694 = vmul.f32 %v676, %v690
          %695 = vset.pattern.permute.xlu0 1
          %696 = vperm.xlu0 %695, %v671
          %v697 = vpop.permute.xlu0 %696
          %v699 = vperm.slane %v672, 1
          %v700 = vperm.slane %v672, 3
          %v701 = vperm.slane %v672, 5
          %v702 = vperm.slane %v672, 7
          %v707 = vperm.slane %v699, 1
          %v708 = vperm.slane %v700, 1
          %v709 = vperm.slane %v701, 1
          %v710 = vperm.slane %v702, 1
          %v711 = vmul.f32 %v697, %v707
          %v712 = vmul.f32 %v697, %v708
          %v713 = vmul.f32 %v697, %v709
          %v714 = vmul.f32 %v697, %v710
          %v715 = vadd.f32 %v691, %v711
          %v716 = vadd.f32 %v692, %v712
          %v717 = vadd.f32 %v693, %v713
          %v718 = vadd.f32 %v694, %v714
          %v719 = vld [vmem:[#allocation3] sm:$0xff]
          %v720 = vld [vmem:[#allocation3 + $0x8] sm:$0xff]
          %v721 = vld [vmem:[#allocation3 + $0x10] sm:$0xff]
          %v722 = vld [vmem:[#allocation3 + $0x18] sm:$0xff]
          %v723 = vld [vmem:[#allocation3 + $0x20] sm:$0xff]
          %v724 = vld [vmem:[#allocation3 + $0x28] sm:$0xff]
          %v725 = vld [vmem:[#allocation3 + $0x30] sm:$0xff]
          %v726 = vld [vmem:[#allocation3 + $0x38] sm:$0xff]
          %v727 = vld [vmem:[#allocation3 + $0x40] sm:$0xff]
          %v728 = vld [vmem:[#allocation3 + $0x48] sm:$0xff]
          %v729 = vld [vmem:[#allocation3 + $0x50] sm:$0xff]
          %v730 = vld [vmem:[#allocation3 + $0x58] sm:$0xff]
          %v731 = vld [vmem:[#allocation3 + $0x60] sm:$0xff]
          %v732 = vld [vmem:[#allocation3 + $0x68] sm:$0xff]
          %v733 = vld [vmem:[#allocation3 + $0x70] sm:$0xff]
          %v734 = vld [vmem:[#allocation3 + $0x78] sm:$0xff]
          %v735 = vld [vmem:[#allocation3 + $0x80] sm:$0xff]
          %v736 = vld [vmem:[#allocation3 + $0x88] sm:$0xff]
          %v737 = vld [vmem:[#allocation3 + $0x90] sm:$0xff]
          %v738 = vld [vmem:[#allocation3 + $0x98] sm:$0xff]
          %v739 = vld [vmem:[#allocation3 + $0xa0] sm:$0xff]
          %v740 = vld [vmem:[#allocation3 + $0xa8] sm:$0xff]
          %v741 = vld [vmem:[#allocation3 + $0xb0] sm:$0xff]
          %v742 = vld [vmem:[#allocation3 + $0xb8] sm:$0xff]
          %v743 = vld [vmem:[#allocation3 + $0xc0] sm:$0xff]
          %v744 = vld [vmem:[#allocation3 + $0xc8] sm:$0xff]
          %v745 = vld [vmem:[#allocation3 + $0xd0] sm:$0xff]
          %v746 = vld [vmem:[#allocation3 + $0xd8] sm:$0xff]
          %v747 = vld [vmem:[#allocation3 + $0xe0] sm:$0xff]
          %v748 = vld [vmem:[#allocation3 + $0xe8] sm:$0xff]
          %v749 = vld [vmem:[#allocation3 + $0xf0] sm:$0xff]
          %v750 = vld [vmem:[#allocation3 + $0xf8] sm:$0xff]
          %v751 = vld [vmem:[%s10 + $0x2] sm:$0xf]
          %v753 = vperm.slane %v751, 0
          %v754 = vperm.slane %v751, 1
          %v755 = vperm.slane %v751, 2
          %v756 = vperm.slane %v751, 3
          %v793 = vunpack.c.l.b16 %v719
          %v794 = vunpack.c.h.b16 %v719
          %v795 = vunpack.c.l.b16 %v720
          %v796 = vunpack.c.h.b16 %v720
          %v797 = vunpack.c.l.b16 %v721
          %v798 = vunpack.c.h.b16 %v721
          %v799 = vunpack.c.l.b16 %v722
          %v800 = vunpack.c.h.b16 %v722
          %v801 = vunpack.c.l.b16 %v723
          %v802 = vunpack.c.h.b16 %v723
          %v803 = vunpack.c.l.b16 %v724
          %v804 = vunpack.c.h.b16 %v724
          %v805 = vunpack.c.l.b16 %v725
          %v806 = vunpack.c.h.b16 %v725
          %v807 = vunpack.c.l.b16 %v726
          %v808 = vunpack.c.h.b16 %v726
          %v809 = vunpack.c.l.b16 %v727
          %v810 = vunpack.c.h.b16 %v727
          %v811 = vunpack.c.l.b16 %v728
          %v812 = vunpack.c.h.b16 %v728
          %v813 = vunpack.c.l.b16 %v729
          %v814 = vunpack.c.h.b16 %v729
          %v815 = vunpack.c.l.b16 %v730
          %v816 = vunpack.c.h.b16 %v730
          %v817 = vunpack.c.l.b16 %v731
          %v818 = vunpack.c.h.b16 %v731
          %v819 = vunpack.c.l.b16 %v732
          %v820 = vunpack.c.h.b16 %v732
          %v821 = vunpack.c.l.b16 %v733
          %v822 = vunpack.c.h.b16 %v733
          %v823 = vunpack.c.l.b16 %v734
          %v824 = vunpack.c.h.b16 %v734
          %v825 = vunpack.c.l.b16 %v735
          %v826 = vunpack.c.h.b16 %v735
          %v827 = vunpack.c.l.b16 %v736
          %v828 = vunpack.c.h.b16 %v736
          %v829 = vunpack.c.l.b16 %v737
          %v830 = vunpack.c.h.b16 %v737
          %v831 = vunpack.c.l.b16 %v738
          %v832 = vunpack.c.h.b16 %v738
          %v833 = vunpack.c.l.b16 %v739
          %v834 = vunpack.c.h.b16 %v739
          %v835 = vunpack.c.l.b16 %v740
          %v836 = vunpack.c.h.b16 %v740
          %v837 = vunpack.c.l.b16 %v741
          %v838 = vunpack.c.h.b16 %v741
          %v839 = vunpack.c.l.b16 %v742
          %v840 = vunpack.c.h.b16 %v742
          %v841 = vunpack.c.l.b16 %v743
          %v842 = vunpack.c.h.b16 %v743
          %v843 = vunpack.c.l.b16 %v744
          %v844 = vunpack.c.h.b16 %v744
          %v845 = vunpack.c.l.b16 %v745
          %v846 = vunpack.c.h.b16 %v745
          %v847 = vunpack.c.l.b16 %v746
          %v848 = vunpack.c.h.b16 %v746
          %v849 = vunpack.c.l.b16 %v747
          %v850 = vunpack.c.h.b16 %v747
          %v851 = vunpack.c.l.b16 %v748
          %v852 = vunpack.c.h.b16 %v748
          %v853 = vunpack.c.l.b16 %v749
          %v854 = vunpack.c.h.b16 %v749
          %v855 = vunpack.c.l.b16 %v750
          %v856 = vunpack.c.h.b16 %v750
          %v857 = vpack.c.b16 %v797, %v793
          %v858 = vpack.c.b16 %v798, %v794
          %v859 = vpack.c.b16 %v799, %v795
          %v860 = vpack.c.b16 %v800, %v796
          %v861 = vpack.c.b16 %v805, %v801
          %v862 = vpack.c.b16 %v806, %v802
          %v863 = vpack.c.b16 %v807, %v803
          %v864 = vpack.c.b16 %v808, %v804
          %v865 = vpack.c.b16 %v813, %v809
          %v866 = vpack.c.b16 %v814, %v810
          %v867 = vpack.c.b16 %v815, %v811
          %v868 = vpack.c.b16 %v816, %v812
          %v869 = vpack.c.b16 %v821, %v817
          %v870 = vpack.c.b16 %v822, %v818
          %v871 = vpack.c.b16 %v823, %v819
          %v872 = vpack.c.b16 %v824, %v820
          %v873 = vpack.c.b16 %v829, %v825
          %v874 = vpack.c.b16 %v830, %v826
          %v875 = vpack.c.b16 %v831, %v827
          %v876 = vpack.c.b16 %v832, %v828
          %v877 = vpack.c.b16 %v837, %v833
          %v878 = vpack.c.b16 %v838, %v834
          %v879 = vpack.c.b16 %v839, %v835
          %v880 = vpack.c.b16 %v840, %v836
          %v881 = vpack.c.b16 %v845, %v841
          %v882 = vpack.c.b16 %v846, %v842
          %v883 = vpack.c.b16 %v847, %v843
          %v884 = vpack.c.b16 %v848, %v844
          %v885 = vpack.c.b16 %v853, %v849
          %v886 = vpack.c.b16 %v854, %v850
          %v887 = vpack.c.b16 %v855, %v851
          %v888 = vpack.c.b16 %v856, %v852
          %921 = vmatpush.bf16.msra.mxu0 %v885
          %922 = vmatpush.bf16.msra.mxu0 %v881
          %923 = vmatpush.bf16.msra.mxu0 %v877
          %924 = vmatpush.bf16.msra.mxu0 %v873
          %925 = vmatpush.bf16.msra.mxu0 %v869
          %926 = vmatpush.bf16.msra.mxu0 %v865
          %927 = vmatpush.bf16.msra.mxu0 %v861
          %928 = vmatpush.bf16.msra.mxu0 %v857
          %929 = vmatmul.bf16.gmra.mxu0 %v670
          %v930 = vpop.f32.mrf.mxu0
          %v931 = vadd.f32 %v753, %v930
          %v932 = vpop.f32.mrf.mxu0
          %933 = vdwg.mxu0
          %934 = vmatpush.bf16.msra.mxu0 %v886
          %935 = vmatpush.bf16.msra.mxu0 %v882
          %936 = vmatpush.bf16.msra.mxu0 %v878
          %937 = vmatpush.bf16.msra.mxu0 %v874
          %938 = vmatpush.bf16.msra.mxu0 %v870
          %939 = vmatpush.bf16.msra.mxu0 %v866
          %940 = vmatpush.bf16.msra.mxu0 %v862
          %941 = vmatpush.bf16.msra.mxu0 %v858
          %942 = vmatmul.bf16.gmra.mxu0 %v670
          %v943 = vpop.f32.mrf.mxu0
          %v944 = vadd.f32 %v754, %v943
          %v945 = vpop.f32.mrf.mxu0
          %946 = vdwg.mxu0
          %947 = vmatpush.bf16.msra.mxu0 %v887
          %948 = vmatpush.bf16.msra.mxu0 %v883
          %949 = vmatpush.bf16.msra.mxu0 %v879
          %950 = vmatpush.bf16.msra.mxu0 %v875
          %951 = vmatpush.bf16.msra.mxu0 %v871
          %952 = vmatpush.bf16.msra.mxu0 %v867
          %953 = vmatpush.bf16.msra.mxu0 %v863
          %954 = vmatpush.bf16.msra.mxu0 %v859
          %955 = vmatmul.bf16.gmra.mxu0 %v670
          %v956 = vpop.f32.mrf.mxu0
          %v957 = vadd.f32 %v755, %v956
          %v958 = vpop.f32.mrf.mxu0
          %959 = vdwg.mxu0
          %960 = vmatpush.bf16.msra.mxu0 %v888
          %961 = vmatpush.bf16.msra.mxu0 %v884
          %962 = vmatpush.bf16.msra.mxu0 %v880
          %963 = vmatpush.bf16.msra.mxu0 %v876
          %964 = vmatpush.bf16.msra.mxu0 %v872
          %965 = vmatpush.bf16.msra.mxu0 %v868
          %966 = vmatpush.bf16.msra.mxu0 %v864
          %967 = vmatpush.bf16.msra.mxu0 %v860
          %968 = vmatmul.bf16.gmra.mxu0 %v670
          %v969 = vpop.f32.mrf.mxu0
          %v970 = vadd.f32 %v756, %v969
          %v971 = vpop.f32.mrf.mxu0
          %972 = vdwg.mxu0
          %v973 = vadd.f32 %v931, %v715
          %v974 = vadd.f32 %v944, %v716
          %v975 = vadd.f32 %v957, %v717
          %v976 = vadd.f32 %v970, %v718
          %v977 = vmax.f32 %v973, 0.0
          %v978 = vmax.f32 %v974, 0.0
          %v979 = vmax.f32 %v975, 0.0
          %v980 = vmax.f32 %v976, 0.0
          %v981 = vpack.c.bf16 %v977, %v977
          %v982 = vpack.c.bf16 %v978, %v978
          %v983 = vpack.c.bf16 %v979, %v979
          %v984 = vpack.c.bf16 %v980, %v980
          %v985 = vld [vmem:[#allocation6] sm:$0xff]
          %v986 = vld [vmem:[#allocation6 + $0x8] sm:$0xff]
          %v987 = vld [vmem:[#allocation6 + $0x10] sm:$0xff]
          %v988 = vld [vmem:[#allocation6 + $0x18] sm:$0xff]
          %v989 = vld [vmem:[#allocation6 + $0x20] sm:$0xff]
          %v990 = vld [vmem:[#allocation6 + $0x28] sm:$0xff]
          %v991 = vld [vmem:[#allocation6 + $0x30] sm:$0xff]
          %v992 = vld [vmem:[#allocation6 + $0x38] sm:$0xff]
          %v993 = vld [vmem:[#allocation6 + $0x40] sm:$0xff]
          %v994 = vld [vmem:[#allocation6 + $0x48] sm:$0xff]
          %v995 = vld [vmem:[#allocation6 + $0x50] sm:$0xff]
          %v996 = vld [vmem:[#allocation6 + $0x58] sm:$0xff]
          %v997 = vld [vmem:[#allocation6 + $0x60] sm:$0xff]
          %v998 = vld [vmem:[#allocation6 + $0x68] sm:$0xff]
          %v999 = vld [vmem:[#allocation6 + $0x70] sm:$0xff]
          %v1000 = vld [vmem:[#allocation6 + $0x78] sm:$0xff]
          %v1001 = vld [vmem:[#allocation6 + $0x80] sm:$0xff]
          %v1002 = vld [vmem:[#allocation6 + $0x88] sm:$0xff]
          %v1003 = vld [vmem:[#allocation6 + $0x90] sm:$0xff]
          %v1004 = vld [vmem:[#allocation6 + $0x98] sm:$0xff]
          %v1005 = vld [vmem:[#allocation6 + $0xa0] sm:$0xff]
          %v1006 = vld [vmem:[#allocation6 + $0xa8] sm:$0xff]
          %v1007 = vld [vmem:[#allocation6 + $0xb0] sm:$0xff]
          %v1008 = vld [vmem:[#allocation6 + $0xb8] sm:$0xff]
          %v1009 = vld [vmem:[#allocation6 + $0xc0] sm:$0xff]
          %v1010 = vld [vmem:[#allocation6 + $0xc8] sm:$0xff]
          %v1011 = vld [vmem:[#allocation6 + $0xd0] sm:$0xff]
          %v1012 = vld [vmem:[#allocation6 + $0xd8] sm:$0xff]
          %v1013 = vld [vmem:[#allocation6 + $0xe0] sm:$0xff]
          %v1014 = vld [vmem:[#allocation6 + $0xe8] sm:$0xff]
          %v1015 = vld [vmem:[#allocation6 + $0xf0] sm:$0xff]
          %v1016 = vld [vmem:[#allocation6 + $0xf8] sm:$0xff]
          %v1017 = vld [vmem:[#allocation6 + $0x100] sm:$0xff]
          %v1018 = vld [vmem:[#allocation6 + $0x108] sm:$0xff]
          %v1019 = vld [vmem:[#allocation6 + $0x110] sm:$0xff]
          %v1020 = vld [vmem:[#allocation6 + $0x118] sm:$0xff]
          %v1021 = vld [vmem:[#allocation6 + $0x120] sm:$0xff]
          %v1022 = vld [vmem:[#allocation6 + $0x128] sm:$0xff]
          %v1023 = vld [vmem:[#allocation6 + $0x130] sm:$0xff]
          %v1024 = vld [vmem:[#allocation6 + $0x138] sm:$0xff]
          %v1025 = vld [vmem:[#allocation6 + $0x140] sm:$0xff]
          %v1026 = vld [vmem:[#allocation6 + $0x148] sm:$0xff]
          %v1027 = vld [vmem:[#allocation6 + $0x150] sm:$0xff]
          %v1028 = vld [vmem:[#allocation6 + $0x158] sm:$0xff]
          %v1029 = vld [vmem:[#allocation6 + $0x160] sm:$0xff]
          %v1030 = vld [vmem:[#allocation6 + $0x168] sm:$0xff]
          %v1031 = vld [vmem:[#allocation6 + $0x170] sm:$0xff]
          %v1032 = vld [vmem:[#allocation6 + $0x178] sm:$0xff]
          %v1033 = vld [vmem:[#allocation6 + $0x180] sm:$0xff]
          %v1034 = vld [vmem:[#allocation6 + $0x188] sm:$0xff]
          %v1035 = vld [vmem:[#allocation6 + $0x190] sm:$0xff]
          %v1036 = vld [vmem:[#allocation6 + $0x198] sm:$0xff]
          %v1037 = vld [vmem:[#allocation6 + $0x1a0] sm:$0xff]
          %v1038 = vld [vmem:[#allocation6 + $0x1a8] sm:$0xff]
          %v1039 = vld [vmem:[#allocation6 + $0x1b0] sm:$0xff]
          %v1040 = vld [vmem:[#allocation6 + $0x1b8] sm:$0xff]
          %v1041 = vld [vmem:[#allocation6 + $0x1c0] sm:$0xff]
          %v1042 = vld [vmem:[#allocation6 + $0x1c8] sm:$0xff]
          %v1043 = vld [vmem:[#allocation6 + $0x1d0] sm:$0xff]
          %v1044 = vld [vmem:[#allocation6 + $0x1d8] sm:$0xff]
          %v1045 = vld [vmem:[#allocation6 + $0x1e0] sm:$0xff]
          %v1046 = vld [vmem:[#allocation6 + $0x1e8] sm:$0xff]
          %v1047 = vld [vmem:[#allocation6 + $0x1f0] sm:$0xff]
          %v1048 = vld [vmem:[#allocation6 + $0x1f8] sm:$0xff]
          %v1049 = vld [vmem:[%s10 + $0x6] sm:$0x3]
          %v1051 = vperm.slane %v1049, 0
          %v1052 = vperm.slane %v1049, 1
          %v1119 = vunpack.c.l.b16 %v985
          %v1120 = vunpack.c.h.b16 %v985
          %v1121 = vunpack.c.l.b16 %v986
          %v1122 = vunpack.c.h.b16 %v986
          %v1123 = vunpack.c.l.b16 %v987
          %v1124 = vunpack.c.h.b16 %v987
          %v1125 = vunpack.c.l.b16 %v988
          %v1126 = vunpack.c.h.b16 %v988
          %v1127 = vunpack.c.l.b16 %v989
          %v1128 = vunpack.c.h.b16 %v989
          %v1129 = vunpack.c.l.b16 %v990
          %v1130 = vunpack.c.h.b16 %v990
          %v1131 = vunpack.c.l.b16 %v991
          %v1132 = vunpack.c.h.b16 %v991
          %v1133 = vunpack.c.l.b16 %v992
          %v1134 = vunpack.c.h.b16 %v992
          %v1135 = vunpack.c.l.b16 %v993
          %v1136 = vunpack.c.h.b16 %v993
          %v1137 = vunpack.c.l.b16 %v994
          %v1138 = vunpack.c.h.b16 %v994
          %v1139 = vunpack.c.l.b16 %v995
          %v1140 = vunpack.c.h.b16 %v995
          %v1141 = vunpack.c.l.b16 %v996
          %v1142 = vunpack.c.h.b16 %v996
          %v1143 = vunpack.c.l.b16 %v997
          %v1144 = vunpack.c.h.b16 %v997
          %v1145 = vunpack.c.l.b16 %v998
          %v1146 = vunpack.c.h.b16 %v998
          %v1147 = vunpack.c.l.b16 %v999
          %v1148 = vunpack.c.h.b16 %v999
          %v1149 = vunpack.c.l.b16 %v1000
          %v1150 = vunpack.c.h.b16 %v1000
          %v1151 = vunpack.c.l.b16 %v1001
          %v1152 = vunpack.c.h.b16 %v1001
          %v1153 = vunpack.c.l.b16 %v1002
          %v1154 = vunpack.c.h.b16 %v1002
          %v1155 = vunpack.c.l.b16 %v1003
          %v1156 = vunpack.c.h.b16 %v1003
          %v1157 = vunpack.c.l.b16 %v1004
          %v1158 = vunpack.c.h.b16 %v1004
          %v1159 = vunpack.c.l.b16 %v1005
          %v1160 = vunpack.c.h.b16 %v1005
          %v1161 = vunpack.c.l.b16 %v1006
          %v1162 = vunpack.c.h.b16 %v1006
          %v1163 = vunpack.c.l.b16 %v1007
          %v1164 = vunpack.c.h.b16 %v1007
          %v1165 = vunpack.c.l.b16 %v1008
          %v1166 = vunpack.c.h.b16 %v1008
          %v1167 = vunpack.c.l.b16 %v1009
          %v1168 = vunpack.c.h.b16 %v1009
          %v1169 = vunpack.c.l.b16 %v1010
          %v1170 = vunpack.c.h.b16 %v1010
          %v1171 = vunpack.c.l.b16 %v1011
          %v1172 = vunpack.c.h.b16 %v1011
          %v1173 = vunpack.c.l.b16 %v1012
          %v1174 = vunpack.c.h.b16 %v1012
          %v1175 = vunpack.c.l.b16 %v1013
          %v1176 = vunpack.c.h.b16 %v1013
          %v1177 = vunpack.c.l.b16 %v1014
          %v1178 = vunpack.c.h.b16 %v1014
          %v1179 = vunpack.c.l.b16 %v1015
          %v1180 = vunpack.c.h.b16 %v1015
          %v1181 = vunpack.c.l.b16 %v1016
          %v1182 = vunpack.c.h.b16 %v1016
          %v1183 = vunpack.c.l.b16 %v1017
          %v1184 = vunpack.c.h.b16 %v1017
          %v1185 = vunpack.c.l.b16 %v1018
          %v1186 = vunpack.c.h.b16 %v1018
          %v1187 = vunpack.c.l.b16 %v1019
          %v1188 = vunpack.c.h.b16 %v1019
          %v1189 = vunpack.c.l.b16 %v1020
          %v1190 = vunpack.c.h.b16 %v1020
          %v1191 = vunpack.c.l.b16 %v1021
          %v1192 = vunpack.c.h.b16 %v1021
          %v1193 = vunpack.c.l.b16 %v1022
          %v1194 = vunpack.c.h.b16 %v1022
          %v1195 = vunpack.c.l.b16 %v1023
          %v1196 = vunpack.c.h.b16 %v1023
          %v1197 = vunpack.c.l.b16 %v1024
          %v1198 = vunpack.c.h.b16 %v1024
          %v1199 = vunpack.c.l.b16 %v1025
          %v1200 = vunpack.c.h.b16 %v1025
          %v1201 = vunpack.c.l.b16 %v1026
          %v1202 = vunpack.c.h.b16 %v1026
          %v1203 = vunpack.c.l.b16 %v1027
          %v1204 = vunpack.c.h.b16 %v1027
          %v1205 = vunpack.c.l.b16 %v1028
          %v1206 = vunpack.c.h.b16 %v1028
          %v1207 = vunpack.c.l.b16 %v1029
          %v1208 = vunpack.c.h.b16 %v1029
          %v1209 = vunpack.c.l.b16 %v1030
          %v1210 = vunpack.c.h.b16 %v1030
          %v1211 = vunpack.c.l.b16 %v1031
          %v1212 = vunpack.c.h.b16 %v1031
          %v1213 = vunpack.c.l.b16 %v1032
          %v1214 = vunpack.c.h.b16 %v1032
          %v1215 = vunpack.c.l.b16 %v1033
          %v1216 = vunpack.c.h.b16 %v1033
          %v1217 = vunpack.c.l.b16 %v1034
          %v1218 = vunpack.c.h.b16 %v1034
          %v1219 = vunpack.c.l.b16 %v1035
          %v1220 = vunpack.c.h.b16 %v1035
          %v1221 = vunpack.c.l.b16 %v1036
          %v1222 = vunpack.c.h.b16 %v1036
          %v1223 = vunpack.c.l.b16 %v1037
          %v1224 = vunpack.c.h.b16 %v1037
          %v1225 = vunpack.c.l.b16 %v1038
          %v1226 = vunpack.c.h.b16 %v1038
          %v1227 = vunpack.c.l.b16 %v1039
          %v1228 = vunpack.c.h.b16 %v1039
          %v1229 = vunpack.c.l.b16 %v1040
          %v1230 = vunpack.c.h.b16 %v1040
          %v1231 = vunpack.c.l.b16 %v1041
          %v1232 = vunpack.c.h.b16 %v1041
          %v1233 = vunpack.c.l.b16 %v1042
          %v1234 = vunpack.c.h.b16 %v1042
          %v1235 = vunpack.c.l.b16 %v1043
          %v1236 = vunpack.c.h.b16 %v1043
          %v1237 = vunpack.c.l.b16 %v1044
          %v1238 = vunpack.c.h.b16 %v1044
          %v1239 = vunpack.c.l.b16 %v1045
          %v1240 = vunpack.c.h.b16 %v1045
          %v1241 = vunpack.c.l.b16 %v1046
          %v1242 = vunpack.c.h.b16 %v1046
          %v1243 = vunpack.c.l.b16 %v1047
          %v1244 = vunpack.c.h.b16 %v1047
          %v1245 = vunpack.c.l.b16 %v1048
          %v1246 = vunpack.c.h.b16 %v1048
          %v1247 = vpack.c.b16 %v1121, %v1119
          %v1248 = vpack.c.b16 %v1122, %v1120
          %v1249 = vpack.c.b16 %v1125, %v1123
          %v1250 = vpack.c.b16 %v1126, %v1124
          %v1251 = vpack.c.b16 %v1129, %v1127
          %v1252 = vpack.c.b16 %v1130, %v1128
          %v1253 = vpack.c.b16 %v1133, %v1131
          %v1254 = vpack.c.b16 %v1134, %v1132
          %v1255 = vpack.c.b16 %v1137, %v1135
          %v1256 = vpack.c.b16 %v1138, %v1136
          %v1257 = vpack.c.b16 %v1141, %v1139
          %v1258 = vpack.c.b16 %v1142, %v1140
          %v1259 = vpack.c.b16 %v1145, %v1143
          %v1260 = vpack.c.b16 %v1146, %v1144
          %v1261 = vpack.c.b16 %v1149, %v1147
          %v1262 = vpack.c.b16 %v1150, %v1148
          %v1263 = vpack.c.b16 %v1153, %v1151
          %v1264 = vpack.c.b16 %v1154, %v1152
          %v1265 = vpack.c.b16 %v1157, %v1155
          %v1266 = vpack.c.b16 %v1158, %v1156
          %v1267 = vpack.c.b16 %v1161, %v1159
          %v1268 = vpack.c.b16 %v1162, %v1160
          %v1269 = vpack.c.b16 %v1165, %v1163
          %v1270 = vpack.c.b16 %v1166, %v1164
          %v1271 = vpack.c.b16 %v1169, %v1167
          %v1272 = vpack.c.b16 %v1170, %v1168
          %v1273 = vpack.c.b16 %v1173, %v1171
          %v1274 = vpack.c.b16 %v1174, %v1172
          %v1275 = vpack.c.b16 %v1177, %v1175
          %v1276 = vpack.c.b16 %v1178, %v1176
          %v1277 = vpack.c.b16 %v1181, %v1179
          %v1278 = vpack.c.b16 %v1182, %v1180
          %v1279 = vpack.c.b16 %v1185, %v1183
          %v1280 = vpack.c.b16 %v1186, %v1184
          %v1281 = vpack.c.b16 %v1189, %v1187
          %v1282 = vpack.c.b16 %v1190, %v1188
          %v1283 = vpack.c.b16 %v1193, %v1191
          %v1284 = vpack.c.b16 %v1194, %v1192
          %v1285 = vpack.c.b16 %v1197, %v1195
          %v1286 = vpack.c.b16 %v1198, %v1196
          %v1287 = vpack.c.b16 %v1201, %v1199
          %v1288 = vpack.c.b16 %v1202, %v1200
          %v1289 = vpack.c.b16 %v1205, %v1203
          %v1290 = vpack.c.b16 %v1206, %v1204
          %v1291 = vpack.c.b16 %v1209, %v1207
          %v1292 = vpack.c.b16 %v1210, %v1208
          %v1293 = vpack.c.b16 %v1213, %v1211
          %v1294 = vpack.c.b16 %v1214, %v1212
          %v1295 = vpack.c.b16 %v1217, %v1215
          %v1296 = vpack.c.b16 %v1218, %v1216
          %v1297 = vpack.c.b16 %v1221, %v1219
          %v1298 = vpack.c.b16 %v1222, %v1220
          %v1299 = vpack.c.b16 %v1225, %v1223
          %v1300 = vpack.c.b16 %v1226, %v1224
          %v1301 = vpack.c.b16 %v1229, %v1227
          %v1302 = vpack.c.b16 %v1230, %v1228
          %v1303 = vpack.c.b16 %v1233, %v1231
          %v1304 = vpack.c.b16 %v1234, %v1232
          %v1305 = vpack.c.b16 %v1237, %v1235
          %v1306 = vpack.c.b16 %v1238, %v1236
          %v1307 = vpack.c.b16 %v1241, %v1239
          %v1308 = vpack.c.b16 %v1242, %v1240
          %v1309 = vpack.c.b16 %v1245, %v1243
          %v1310 = vpack.c.b16 %v1246, %v1244
          %1375 = vmatpush.bf16.msra.mxu0 %v1261
          %1376 = vmatpush.bf16.msra.mxu0 %v1259
          %1377 = vmatpush.bf16.msra.mxu0 %v1257
          %1378 = vmatpush.bf16.msra.mxu0 %v1255
          %1379 = vmatpush.bf16.msra.mxu0 %v1253
          %1380 = vmatpush.bf16.msra.mxu0 %v1251
          %1381 = vmatpush.bf16.msra.mxu0 %v1249
          %1382 = vmatpush.bf16.msra.mxu0 %v1247
          %1383 = vmatmul.bf16.gmra.mxu0 %v981
          %v1384 = vpop.f32.mrf.mxu0
          %v1385 = vadd.f32 %v1051, %v1384
          %v1386 = vpop.f32.mrf.mxu0
          %1387 = vdwg.mxu0
          %1388 = vmatpush.bf16.msra.mxu0 %v1277
          %1389 = vmatpush.bf16.msra.mxu0 %v1275
          %1390 = vmatpush.bf16.msra.mxu0 %v1273
          %1391 = vmatpush.bf16.msra.mxu0 %v1271
          %1392 = vmatpush.bf16.msra.mxu0 %v1269
          %1393 = vmatpush.bf16.msra.mxu0 %v1267
          %1394 = vmatpush.bf16.msra.mxu0 %v1265
          %1395 = vmatpush.bf16.msra.mxu0 %v1263
          %1396 = vmatmul.bf16.gmra.mxu0 %v982
          %v1397 = vpop.f32.mrf.mxu0
          %v1398 = vadd.f32 %v1385, %v1397
          %v1399 = vpop.f32.mrf.mxu0
          %1400 = vdwg.mxu0
          %1401 = vmatpush.bf16.msra.mxu0 %v1293
          %1402 = vmatpush.bf16.msra.mxu0 %v1291
          %1403 = vmatpush.bf16.msra.mxu0 %v1289
          %1404 = vmatpush.bf16.msra.mxu0 %v1287
          %1405 = vmatpush.bf16.msra.mxu0 %v1285
          %1406 = vmatpush.bf16.msra.mxu0 %v1283
          %1407 = vmatpush.bf16.msra.mxu0 %v1281
          %1408 = vmatpush.bf16.msra.mxu0 %v1279
          %1409 = vmatmul.bf16.gmra.mxu0 %v983
          %v1410 = vpop.f32.mrf.mxu0
          %v1411 = vadd.f32 %v1398, %v1410
          %v1412 = vpop.f32.mrf.mxu0
          %1413 = vdwg.mxu0
          %1414 = vmatpush.bf16.msra.mxu0 %v1309
          %1415 = vmatpush.bf16.msra.mxu0 %v1307
          %1416 = vmatpush.bf16.msra.mxu0 %v1305
          %1417 = vmatpush.bf16.msra.mxu0 %v1303
          %1418 = vmatpush.bf16.msra.mxu0 %v1301
          %1419 = vmatpush.bf16.msra.mxu0 %v1299
          %1420 = vmatpush.bf16.msra.mxu0 %v1297
          %1421 = vmatpush.bf16.msra.mxu0 %v1295
          %1422 = vmatmul.bf16.gmra.mxu0 %v984
          %v1423 = vpop.f32.mrf.mxu0
          %v1424 = vadd.f32 %v1411, %v1423
          %v1425 = vpop.f32.mrf.mxu0
          %1426 = vdwg.mxu0
          %1427 = vmatpush.bf16.msra.mxu0 %v1262
          %1428 = vmatpush.bf16.msra.mxu0 %v1260
          %1429 = vmatpush.bf16.msra.mxu0 %v1258
          %1430 = vmatpush.bf16.msra.mxu0 %v1256
          %1431 = vmatpush.bf16.msra.mxu0 %v1254
          %1432 = vmatpush.bf16.msra.mxu0 %v1252
          %1433 = vmatpush.bf16.msra.mxu0 %v1250
          %1434 = vmatpush.bf16.msra.mxu0 %v1248
          %1435 = vmatmul.bf16.gmra.mxu0 %v981
          %v1436 = vpop.f32.mrf.mxu0
          %v1437 = vadd.f32 %v1052, %v1436
          %v1438 = vpop.f32.mrf.mxu0
          %1439 = vdwg.mxu0
          %1440 = vmatpush.bf16.msra.mxu0 %v1278
          %1441 = vmatpush.bf16.msra.mxu0 %v1276
          %1442 = vmatpush.bf16.msra.mxu0 %v1274
          %1443 = vmatpush.bf16.msra.mxu0 %v1272
          %1444 = vmatpush.bf16.msra.mxu0 %v1270
          %1445 = vmatpush.bf16.msra.mxu0 %v1268
          %1446 = vmatpush.bf16.msra.mxu0 %v1266
          %1447 = vmatpush.bf16.msra.mxu0 %v1264
          %1448 = vmatmul.bf16.gmra.mxu0 %v982
          %v1449 = vpop.f32.mrf.mxu0
          %v1450 = vadd.f32 %v1437, %v1449
          %v1451 = vpop.f32.mrf.mxu0
          %1452 = vdwg.mxu0
          %1453 = vmatpush.bf16.msra.mxu0 %v1294
          %1454 = vmatpush.bf16.msra.mxu0 %v1292
          %1455 = vmatpush.bf16.msra.mxu0 %v1290
          %1456 = vmatpush.bf16.msra.mxu0 %v1288
          %1457 = vmatpush.bf16.msra.mxu0 %v1286
          %1458 = vmatpush.bf16.msra.mxu0 %v1284
          %1459 = vmatpush.bf16.msra.mxu0 %v1282
          %1460 = vmatpush.bf16.msra.mxu0 %v1280
          %1461 = vmatmul.bf16.gmra.mxu0 %v983
          %v1462 = vpop.f32.mrf.mxu0
          %v1463 = vadd.f32 %v1450, %v1462
          %v1464 = vpop.f32.mrf.mxu0
          %1465 = vdwg.mxu0
          %1466 = vmatpush.bf16.msra.mxu0 %v1310
          %1467 = vmatpush.bf16.msra.mxu0 %v1308
          %1468 = vmatpush.bf16.msra.mxu0 %v1306
          %1469 = vmatpush.bf16.msra.mxu0 %v1304
          %1470 = vmatpush.bf16.msra.mxu0 %v1302
          %1471 = vmatpush.bf16.msra.mxu0 %v1300
          %1472 = vmatpush.bf16.msra.mxu0 %v1298
          %1473 = vmatpush.bf16.msra.mxu0 %v1296
          %1474 = vmatmul.bf16.gmra.mxu0 %v984
          %v1475 = vpop.f32.mrf.mxu0
          %v1476 = vadd.f32 %v1463, %v1475
          %v1477 = vpop.f32.mrf.mxu0
          %1478 = vdwg.mxu0
          %v1479 = vmax.f32 %v1424, 0.0
          %v1480 = vmax.f32 %v1476, 0.0
          %v1481 = vpack.c.bf16 %v1479, %v1479
          %v1482 = vpack.c.bf16 %v1480, %v1480
          %v1483 = vld [vmem:[#allocation8] sm:$0xff]
          %v1484 = vld [vmem:[#allocation8 + $0x8] sm:$0xf]
          %v1485 = vld [vmem:[#allocation8 + $0xc] sm:$0xff]
          %v1486 = vld [vmem:[#allocation8 + $0x14] sm:$0xf]
          %v1487 = vld [vmem:[#allocation8 + $0x18] sm:$0xff]
          %v1488 = vld [vmem:[#allocation8 + $0x20] sm:$0xf]
          %v1489 = vld [vmem:[#allocation8 + $0x24] sm:$0xff]
          %v1490 = vld [vmem:[#allocation8 + $0x2c] sm:$0xf]
          %v1491 = vld [vmem:[#allocation8 + $0x30] sm:$0xff]
          %v1492 = vld [vmem:[#allocation8 + $0x38] sm:$0xf]
          %v1493 = vld [vmem:[#allocation8 + $0x3c] sm:$0xff]
          %v1494 = vld [vmem:[#allocation8 + $0x44] sm:$0xf]
          %v1495 = vld [vmem:[#allocation8 + $0x48] sm:$0xff]
          %v1496 = vld [vmem:[#allocation8 + $0x50] sm:$0xf]
          %v1497 = vld [vmem:[#allocation8 + $0x54] sm:$0xff]
          %v1498 = vld [vmem:[#allocation8 + $0x5c] sm:$0xf]
          %v1499 = vld [vmem:[#allocation8 + $0x60] sm:$0xff]
          %v1500 = vld [vmem:[#allocation8 + $0x68] sm:$0xf]
          %v1501 = vld [vmem:[#allocation8 + $0x6c] sm:$0xff]
          %v1502 = vld [vmem:[#allocation8 + $0x74] sm:$0xf]
          %v1503 = vld [vmem:[#allocation8 + $0x78] sm:$0xff]
          %v1504 = vld [vmem:[#allocation8 + $0x80] sm:$0xf]
          %v1505 = vld [vmem:[#allocation8 + $0x84] sm:$0xff]
          %v1506 = vld [vmem:[#allocation8 + $0x8c] sm:$0xf]
          %v1507 = vld [vmem:[#allocation8 + $0x90] sm:$0xff]
          %v1508 = vld [vmem:[#allocation8 + $0x98] sm:$0xf]
          %v1509 = vld [vmem:[#allocation8 + $0x9c] sm:$0xff]
          %v1510 = vld [vmem:[#allocation8 + $0xa4] sm:$0xf]
          %v1511 = vld [vmem:[#allocation8 + $0xa8] sm:$0xff]
          %v1512 = vld [vmem:[#allocation8 + $0xb0] sm:$0xf]
          %v1513 = vld [vmem:[#allocation8 + $0xb4] sm:$0xff]
          %v1514 = vld [vmem:[#allocation8 + $0xbc] sm:$0xf]
          %v1515 = vld [vmem:[#allocation8 + $0xc0] sm:$0xff]
          %v1516 = vld [vmem:[#allocation8 + $0xc8] sm:$0xf]
          %v1517 = vld [vmem:[#allocation8 + $0xcc] sm:$0xff]
          %v1518 = vld [vmem:[#allocation8 + $0xd4] sm:$0xf]
          %v1519 = vld [vmem:[#allocation8 + $0xd8] sm:$0xff]
          %v1520 = vld [vmem:[#allocation8 + $0xe0] sm:$0xf]
          %v1521 = vld [vmem:[#allocation8 + $0xe4] sm:$0xff]
          %v1522 = vld [vmem:[#allocation8 + $0xec] sm:$0xf]
          %v1523 = vld [vmem:[#allocation8 + $0xf0] sm:$0xff]
          %v1524 = vld [vmem:[#allocation8 + $0xf8] sm:$0xf]
          %v1525 = vld [vmem:[#allocation8 + $0xfc] sm:$0xff]
          %v1526 = vld [vmem:[#allocation8 + $0x104] sm:$0xf]
          %v1527 = vld [vmem:[#allocation8 + $0x108] sm:$0xff]
          %v1528 = vld [vmem:[#allocation8 + $0x110] sm:$0xf]
          %v1529 = vld [vmem:[#allocation8 + $0x114] sm:$0xff]
          %v1530 = vld [vmem:[#allocation8 + $0x11c] sm:$0xf]
          %v1531 = vld [vmem:[#allocation8 + $0x120] sm:$0xff]
          %v1532 = vld [vmem:[#allocation8 + $0x128] sm:$0xf]
          %v1533 = vld [vmem:[#allocation8 + $0x12c] sm:$0xff]
          %v1534 = vld [vmem:[#allocation8 + $0x134] sm:$0xf]
          %v1535 = vld [vmem:[#allocation8 + $0x138] sm:$0xff]
          %v1536 = vld [vmem:[#allocation8 + $0x140] sm:$0xf]
          %v1537 = vld [vmem:[#allocation8 + $0x144] sm:$0xff]
          %v1538 = vld [vmem:[#allocation8 + $0x14c] sm:$0xf]
          %v1539 = vld [vmem:[#allocation8 + $0x150] sm:$0xff]
          %v1540 = vld [vmem:[#allocation8 + $0x158] sm:$0xf]
          %v1541 = vld [vmem:[#allocation8 + $0x15c] sm:$0xff]
          %v1542 = vld [vmem:[#allocation8 + $0x164] sm:$0xf]
          %v1543 = vld [vmem:[#allocation8 + $0x168] sm:$0xff]
          %v1544 = vld [vmem:[#allocation8 + $0x170] sm:$0xf]
          %v1545 = vld [vmem:[#allocation8 + $0x174] sm:$0xff]
          %v1546 = vld [vmem:[#allocation8 + $0x17c] sm:$0xf]
          %v1547 = vld [vmem:[%s10 + $0x8] sm:$0x7]
          %v1549 = vperm.slane %v1547, 0
          %v1550 = vperm.slane %v1547, 1
          %v1551 = vperm.slane %v1547, 2
          %v1619 = vunpack.c.l.b16 %v1483
          %v1620 = vunpack.c.h.b16 %v1483
          %v1621 = vunpack.c.l.b16 %v1484
          %v1622 = vunpack.c.l.b16 %v1485
          %v1623 = vunpack.c.h.b16 %v1485
          %v1624 = vunpack.c.l.b16 %v1486
          %v1625 = vunpack.c.l.b16 %v1487
          %v1626 = vunpack.c.h.b16 %v1487
          %v1627 = vunpack.c.l.b16 %v1488
          %v1628 = vunpack.c.l.b16 %v1489
          %v1629 = vunpack.c.h.b16 %v1489
          %v1630 = vunpack.c.l.b16 %v1490
          %v1631 = vunpack.c.l.b16 %v1491
          %v1632 = vunpack.c.h.b16 %v1491
          %v1633 = vunpack.c.l.b16 %v1492
          %v1634 = vunpack.c.l.b16 %v1493
          %v1635 = vunpack.c.h.b16 %v1493
          %v1636 = vunpack.c.l.b16 %v1494
          %v1637 = vunpack.c.l.b16 %v1495
          %v1638 = vunpack.c.h.b16 %v1495
          %v1639 = vunpack.c.l.b16 %v1496
          %v1640 = vunpack.c.l.b16 %v1497
          %v1641 = vunpack.c.h.b16 %v1497
          %v1642 = vunpack.c.l.b16 %v1498
          %v1643 = vunpack.c.l.b16 %v1499
          %v1644 = vunpack.c.h.b16 %v1499
          %v1645 = vunpack.c.l.b16 %v1500
          %v1646 = vunpack.c.l.b16 %v1501
          %v1647 = vunpack.c.h.b16 %v1501
          %v1648 = vunpack.c.l.b16 %v1502
          %v1649 = vunpack.c.l.b16 %v1503
          %v1650 = vunpack.c.h.b16 %v1503
          %v1651 = vunpack.c.l.b16 %v1504
          %v1652 = vunpack.c.l.b16 %v1505
          %v1653 = vunpack.c.h.b16 %v1505
          %v1654 = vunpack.c.l.b16 %v1506
          %v1655 = vunpack.c.l.b16 %v1507
          %v1656 = vunpack.c.h.b16 %v1507
          %v1657 = vunpack.c.l.b16 %v1508
          %v1658 = vunpack.c.l.b16 %v1509
          %v1659 = vunpack.c.h.b16 %v1509
          %v1660 = vunpack.c.l.b16 %v1510
          %v1661 = vunpack.c.l.b16 %v1511
          %v1662 = vunpack.c.h.b16 %v1511
          %v1663 = vunpack.c.l.b16 %v1512
          %v1664 = vunpack.c.l.b16 %v1513
          %v1665 = vunpack.c.h.b16 %v1513
          %v1666 = vunpack.c.l.b16 %v1514
          %v1667 = vunpack.c.l.b16 %v1515
          %v1668 = vunpack.c.h.b16 %v1515
          %v1669 = vunpack.c.l.b16 %v1516
          %v1670 = vunpack.c.l.b16 %v1517
          %v1671 = vunpack.c.h.b16 %v1517
          %v1672 = vunpack.c.l.b16 %v1518
          %v1673 = vunpack.c.l.b16 %v1519
          %v1674 = vunpack.c.h.b16 %v1519
          %v1675 = vunpack.c.l.b16 %v1520
          %v1676 = vunpack.c.l.b16 %v1521
          %v1677 = vunpack.c.h.b16 %v1521
          %v1678 = vunpack.c.l.b16 %v1522
          %v1679 = vunpack.c.l.b16 %v1523
          %v1680 = vunpack.c.h.b16 %v1523
          %v1681 = vunpack.c.l.b16 %v1524
          %v1682 = vunpack.c.l.b16 %v1525
          %v1683 = vunpack.c.h.b16 %v1525
          %v1684 = vunpack.c.l.b16 %v1526
          %v1685 = vunpack.c.l.b16 %v1527
          %v1686 = vunpack.c.h.b16 %v1527
          %v1687 = vunpack.c.l.b16 %v1528
          %v1688 = vunpack.c.l.b16 %v1529
          %v1689 = vunpack.c.h.b16 %v1529
          %v1690 = vunpack.c.l.b16 %v1530
          %v1691 = vunpack.c.l.b16 %v1531
          %v1692 = vunpack.c.h.b16 %v1531
          %v1693 = vunpack.c.l.b16 %v1532
          %v1694 = vunpack.c.l.b16 %v1533
          %v1695 = vunpack.c.h.b16 %v1533
          %v1696 = vunpack.c.l.b16 %v1534
          %v1697 = vunpack.c.l.b16 %v1535
          %v1698 = vunpack.c.h.b16 %v1535
          %v1699 = vunpack.c.l.b16 %v1536
          %v1700 = vunpack.c.l.b16 %v1537
          %v1701 = vunpack.c.h.b16 %v1537
          %v1702 = vunpack.c.l.b16 %v1538
          %v1703 = vunpack.c.l.b16 %v1539
          %v1704 = vunpack.c.h.b16 %v1539
          %v1705 = vunpack.c.l.b16 %v1540
          %v1706 = vunpack.c.l.b16 %v1541
          %v1707 = vunpack.c.h.b16 %v1541
          %v1708 = vunpack.c.l.b16 %v1542
          %v1709 = vunpack.c.l.b16 %v1543
          %v1710 = vunpack.c.h.b16 %v1543
          %v1711 = vunpack.c.l.b16 %v1544
          %v1712 = vunpack.c.l.b16 %v1545
          %v1713 = vunpack.c.h.b16 %v1545
          %v1714 = vunpack.c.l.b16 %v1546
          %v1715 = vpack.c.b16 %v1622, %v1619
          %v1716 = vpack.c.b16 %v1623, %v1620
          %v1717 = vpack.c.b16 %v1624, %v1621
          %v1718 = vpack.c.b16 %v1628, %v1625
          %v1719 = vpack.c.b16 %v1629, %v1626
          %v1720 = vpack.c.b16 %v1630, %v1627
          %v1721 = vpack.c.b16 %v1634, %v1631
          %v1722 = vpack.c.b16 %v1635, %v1632
          %v1723 = vpack.c.b16 %v1636, %v1633
          %v1724 = vpack.c.b16 %v1640, %v1637
          %v1725 = vpack.c.b16 %v1641, %v1638
          %v1726 = vpack.c.b16 %v1642, %v1639
          %v1727 = vpack.c.b16 %v1646, %v1643
          %v1728 = vpack.c.b16 %v1647, %v1644
          %v1729 = vpack.c.b16 %v1648, %v1645
          %v1730 = vpack.c.b16 %v1652, %v1649
          %v1731 = vpack.c.b16 %v1653, %v1650
          %v1732 = vpack.c.b16 %v1654, %v1651
          %v1733 = vpack.c.b16 %v1658, %v1655
          %v1734 = vpack.c.b16 %v1659, %v1656
          %v1735 = vpack.c.b16 %v1660, %v1657
          %v1736 = vpack.c.b16 %v1664, %v1661
          %v1737 = vpack.c.b16 %v1665, %v1662
          %v1738 = vpack.c.b16 %v1666, %v1663
          %v1739 = vpack.c.b16 %v1670, %v1667
          %v1740 = vpack.c.b16 %v1671, %v1668
          %v1741 = vpack.c.b16 %v1672, %v1669
          %v1742 = vpack.c.b16 %v1676, %v1673
          %v1743 = vpack.c.b16 %v1677, %v1674
          %v1744 = vpack.c.b16 %v1678, %v1675
          %v1745 = vpack.c.b16 %v1682, %v1679
          %v1746 = vpack.c.b16 %v1683, %v1680
          %v1747 = vpack.c.b16 %v1684, %v1681
          %v1748 = vpack.c.b16 %v1688, %v1685
          %v1749 = vpack.c.b16 %v1689, %v1686
          %v1750 = vpack.c.b16 %v1690, %v1687
          %v1751 = vpack.c.b16 %v1694, %v1691
          %v1752 = vpack.c.b16 %v1695, %v1692
          %v1753 = vpack.c.b16 %v1696, %v1693
          %v1754 = vpack.c.b16 %v1700, %v1697
          %v1755 = vpack.c.b16 %v1701, %v1698
          %v1756 = vpack.c.b16 %v1702, %v1699
          %v1757 = vpack.c.b16 %v1706, %v1703
          %v1758 = vpack.c.b16 %v1707, %v1704
          %v1759 = vpack.c.b16 %v1708, %v1705
          %v1760 = vpack.c.b16 %v1712, %v1709
          %v1761 = vpack.c.b16 %v1713, %v1710
          %v1762 = vpack.c.b16 %v1714, %v1711
          %1811 = vmatpush.bf16.msra.mxu0 %v1736
          %1812 = vmatpush.bf16.msra.mxu0 %v1733
          %1813 = vmatpush.bf16.msra.mxu0 %v1730
          %1814 = vmatpush.bf16.msra.mxu0 %v1727
          %1815 = vmatpush.bf16.msra.mxu0 %v1724
          %1816 = vmatpush.bf16.msra.mxu0 %v1721
          %1817 = vmatpush.bf16.msra.mxu0 %v1718
          %1818 = vmatpush.bf16.msra.mxu0 %v1715
          %1819 = vmatmul.bf16.gmra.mxu0 %v1481
          %v1820 = vpop.f32.mrf.mxu0
          %v1821 = vadd.f32 %v1549, %v1820
          %v1822 = vpop.f32.mrf.mxu0
          %1823 = vdwg.mxu0
          %1824 = vmatpush.bf16.msra.mxu0 %v1760
          %1825 = vmatpush.bf16.msra.mxu0 %v1757
          %1826 = vmatpush.bf16.msra.mxu0 %v1754
          %1827 = vmatpush.bf16.msra.mxu0 %v1751
          %1828 = vmatpush.bf16.msra.mxu0 %v1748
          %1829 = vmatpush.bf16.msra.mxu0 %v1745
          %1830 = vmatpush.bf16.msra.mxu0 %v1742
          %1831 = vmatpush.bf16.msra.mxu0 %v1739
          %1832 = vmatmul.bf16.gmra.mxu0 %v1482
          %v1833 = vpop.f32.mrf.mxu0
          %v1834 = vadd.f32 %v1821, %v1833
          %v1835 = vpop.f32.mrf.mxu0
          %1836 = vdwg.mxu0
          %1837 = vmatpush.bf16.msra.mxu0 %v1737
          %1838 = vmatpush.bf16.msra.mxu0 %v1734
          %1839 = vmatpush.bf16.msra.mxu0 %v1731
          %1840 = vmatpush.bf16.msra.mxu0 %v1728
          %1841 = vmatpush.bf16.msra.mxu0 %v1725
          %1842 = vmatpush.bf16.msra.mxu0 %v1722
          %1843 = vmatpush.bf16.msra.mxu0 %v1719
          %1844 = vmatpush.bf16.msra.mxu0 %v1716
          %1845 = vmatmul.bf16.gmra.mxu0 %v1481
          %v1846 = vpop.f32.mrf.mxu0
          %v1847 = vadd.f32 %v1550, %v1846
          %v1848 = vpop.f32.mrf.mxu0
          %1849 = vdwg.mxu0
          %1850 = vmatpush.bf16.msra.mxu0 %v1761
          %1851 = vmatpush.bf16.msra.mxu0 %v1758
          %1852 = vmatpush.bf16.msra.mxu0 %v1755
          %1853 = vmatpush.bf16.msra.mxu0 %v1752
          %1854 = vmatpush.bf16.msra.mxu0 %v1749
          %1855 = vmatpush.bf16.msra.mxu0 %v1746
          %1856 = vmatpush.bf16.msra.mxu0 %v1743
          %1857 = vmatpush.bf16.msra.mxu0 %v1740
          %1858 = vmatmul.bf16.gmra.mxu0 %v1482
          %v1859 = vpop.f32.mrf.mxu0
          %v1860 = vadd.f32 %v1847, %v1859
          %v1861 = vpop.f32.mrf.mxu0
          %1862 = vdwg.mxu0
          %1863 = vmatpush.bf16.msra.mxu0 %v1738
          %1864 = vmatpush.bf16.msra.mxu0 %v1735
          %1865 = vmatpush.bf16.msra.mxu0 %v1732
          %1866 = vmatpush.bf16.msra.mxu0 %v1729
          %1867 = vmatpush.bf16.msra.mxu0 %v1726
          %1868 = vmatpush.bf16.msra.mxu0 %v1723
          %1869 = vmatpush.bf16.msra.mxu0 %v1720
          %1870 = vmatpush.bf16.msra.mxu0 %v1717
          %1871 = vmatmul.bf16.gmra.mxu0 %v1481
          %v1872 = vpop.f32.mrf.mxu0
          %v1873 = vadd.f32 %v1551, %v1872
          %v1874 = vpop.f32.mrf.mxu0
          %1875 = vdwg.mxu0
          %1876 = vmatpush.bf16.msra.mxu0 %v1762
          %1877 = vmatpush.bf16.msra.mxu0 %v1759
          %1878 = vmatpush.bf16.msra.mxu0 %v1756
          %1879 = vmatpush.bf16.msra.mxu0 %v1753
          %1880 = vmatpush.bf16.msra.mxu0 %v1750
          %1881 = vmatpush.bf16.msra.mxu0 %v1747
          %1882 = vmatpush.bf16.msra.mxu0 %v1744
          %1883 = vmatpush.bf16.msra.mxu0 %v1741
          %1884 = vmatmul.bf16.gmra.mxu0 %v1482
          %v1885 = vpop.f32.mrf.mxu0
          %v1886 = vadd.f32 %v1873, %v1885
          %v1887 = vpop.f32.mrf.mxu0
          %1888 = vdwg.mxu0
          %v1889 = vmax.f32 %v1834, %v1860
          %1890 = vmax.xlane.f32.xlu0 %v1889
          %v1891 = vpop.xlane.xlu0 %1890
          %v1892 = vsub.f32 %v1834, %v1891
          %v1893 = vsub.f32 %v1860, %v1891
          %v1894 = vmul.f32 %v1892, 1.442695
          %v1895 = vpow.pop %v1894
          %v1896 = vmul.f32 %v1893, 1.442695
          %v1897 = vpow.pop %v1896
          %v1898 = vadd.f32 %v1895, %v1897
          %1899 = vadd.xlane.f32.xlu0 %v1898
          %v1900 = vpop.xlane.xlu0 %1899
          %v1901 = vrcp.pop %v1900
          %v1902 = vmul.f32 %v1895, %v1901
          %v1903 = vmul.f32 %v1897, %v1901
          %v1904 = vpack.c.bf16 %v1902, %v1902
          %v1905 = vpack.c.bf16 %v1903, %v1903
          %v1906 = vld [vmem:[#allocation9] sm:$0xf]
          %v1907 = vld [vmem:[#allocation9 + $0x4] sm:$0xf]
          %v1908 = vld [vmem:[#allocation9 + $0x8] sm:$0xf]
          %v1909 = vld [vmem:[#allocation9 + $0xc] sm:$0xf]
          %v1910 = vld [vmem:[#allocation9 + $0x10] sm:$0xf]
          %v1911 = vld [vmem:[#allocation9 + $0x14] sm:$0xf]
          %v1912 = vld [vmem:[#allocation9 + $0x18] sm:$0xf]
          %v1913 = vld [vmem:[#allocation9 + $0x1c] sm:$0xf]
          %v1914 = vld [vmem:[#allocation9 + $0x20] sm:$0xf]
          %v1915 = vld [vmem:[#allocation9 + $0x24] sm:$0xf]
          %v1916 = vld [vmem:[#allocation9 + $0x28] sm:$0xf]
          %v1917 = vld [vmem:[#allocation9 + $0x2c] sm:$0xf]
          %v1918 = vld [vmem:[#allocation9 + $0x30] sm:$0xf]
          %v1919 = vld [vmem:[#allocation9 + $0x34] sm:$0xf]
          %v1920 = vld [vmem:[#allocation9 + $0x38] sm:$0xf]
          %v1921 = vld [vmem:[#allocation9 + $0x3c] sm:$0xf]
          %v1922 = vld [vmem:[#allocation9 + $0x40] sm:$0xf]
          %v1923 = vld [vmem:[#allocation9 + $0x44] sm:$0xf]
          %v1924 = vld [vmem:[#allocation9 + $0x48] sm:$0xf]
          %v1925 = vld [vmem:[#allocation9 + $0x4c] sm:$0xf]
          %v1926 = vld [vmem:[#allocation9 + $0x50] sm:$0xf]
          %v1927 = vld [vmem:[#allocation9 + $0x54] sm:$0xf]
          %v1928 = vld [vmem:[#allocation9 + $0x58] sm:$0xf]
          %v1929 = vld [vmem:[#allocation9 + $0x5c] sm:$0xf]
          %v1930 = vld [vmem:[#allocation9 + $0x60] sm:$0xf]
          %v1931 = vld [vmem:[#allocation9 + $0x64] sm:$0xf]
          %v1932 = vld [vmem:[#allocation9 + $0x68] sm:$0xf]
          %v1933 = vld [vmem:[#allocation9 + $0x6c] sm:$0xf]
          %v1934 = vld [vmem:[#allocation9 + $0x70] sm:$0xf]
          %v1935 = vld [vmem:[#allocation9 + $0x74] sm:$0xf]
          %v1936 = vld [vmem:[#allocation9 + $0x78] sm:$0xf]
          %v1937 = vld [vmem:[#allocation9 + $0x7c] sm:$0xf]
          %v1938 = vld [vmem:[%s10 + $0xb] sm:$0x1]
          %v1940 = vperm.slane %v1938, 0
          %v1974 = vunpack.c.l.b16 %v1906
          %v1975 = vunpack.c.l.b16 %v1907
          %v1976 = vunpack.c.l.b16 %v1908
          %v1977 = vunpack.c.l.b16 %v1909
          %v1978 = vunpack.c.l.b16 %v1910
          %v1979 = vunpack.c.l.b16 %v1911
          %v1980 = vunpack.c.l.b16 %v1912
          %v1981 = vunpack.c.l.b16 %v1913
          %v1982 = vunpack.c.l.b16 %v1914
          %v1983 = vunpack.c.l.b16 %v1915
          %v1984 = vunpack.c.l.b16 %v1916
          %v1985 = vunpack.c.l.b16 %v1917
          %v1986 = vunpack.c.l.b16 %v1918
          %v1987 = vunpack.c.l.b16 %v1919
          %v1988 = vunpack.c.l.b16 %v1920
          %v1989 = vunpack.c.l.b16 %v1921
          %v1990 = vunpack.c.l.b16 %v1922
          %v1991 = vunpack.c.l.b16 %v1923
          %v1992 = vunpack.c.l.b16 %v1924
          %v1993 = vunpack.c.l.b16 %v1925
          %v1994 = vunpack.c.l.b16 %v1926
          %v1995 = vunpack.c.l.b16 %v1927
          %v1996 = vunpack.c.l.b16 %v1928
          %v1997 = vunpack.c.l.b16 %v1929
          %v1998 = vunpack.c.l.b16 %v1930
          %v1999 = vunpack.c.l.b16 %v1931
          %v2000 = vunpack.c.l.b16 %v1932
          %v2001 = vunpack.c.l.b16 %v1933
          %v2002 = vunpack.c.l.b16 %v1934
          %v2003 = vunpack.c.l.b16 %v1935
          %v2004 = vunpack.c.l.b16 %v1936
          %v2005 = vunpack.c.l.b16 %v1937
          %v2006 = vpack.c.b16 %v1975, %v1974
          %v2007 = vpack.c.b16 %v1977, %v1976
          %v2008 = vpack.c.b16 %v1979, %v1978
          %v2009 = vpack.c.b16 %v1981, %v1980
          %v2010 = vpack.c.b16 %v1983, %v1982
          %v2011 = vpack.c.b16 %v1985, %v1984
          %v2012 = vpack.c.b16 %v1987, %v1986
          %v2013 = vpack.c.b16 %v1989, %v1988
          %v2014 = vpack.c.b16 %v1991, %v1990
          %v2015 = vpack.c.b16 %v1993, %v1992
          %v2016 = vpack.c.b16 %v1995, %v1994
          %v2017 = vpack.c.b16 %v1997, %v1996
          %v2018 = vpack.c.b16 %v1999, %v1998
          %v2019 = vpack.c.b16 %v2001, %v2000
          %v2020 = vpack.c.b16 %v2003, %v2002
          %v2021 = vpack.c.b16 %v2005, %v2004
          %2038 = vmatpush.bf16.msra.mxu0 %v2013
          %2039 = vmatpush.bf16.msra.mxu0 %v2012
          %2040 = vmatpush.bf16.msra.mxu0 %v2011
          %2041 = vmatpush.bf16.msra.mxu0 %v2010
          %2042 = vmatpush.bf16.msra.mxu0 %v2009
          %2043 = vmatpush.bf16.msra.mxu0 %v2008
          %2044 = vmatpush.bf16.msra.mxu0 %v2007
          %2045 = vmatpush.bf16.msra.mxu0 %v2006
          %2046 = vmatmul.bf16.gmra.mxu0 %v1904
          %v2047 = vpop.f32.mrf.mxu0
          %v2048 = vadd.f32 %v1940, %v2047
          %v2049 = vpop.f32.mrf.mxu0
          %2050 = vdwg.mxu0
          %2051 = vmatpush.bf16.msra.mxu0 %v2021
          %2052 = vmatpush.bf16.msra.mxu0 %v2020
          %2053 = vmatpush.bf16.msra.mxu0 %v2019
          %2054 = vmatpush.bf16.msra.mxu0 %v2018
          %2055 = vmatpush.bf16.msra.mxu0 %v2017
          %2056 = vmatpush.bf16.msra.mxu0 %v2016
          %2057 = vmatpush.bf16.msra.mxu0 %v2015
          %2058 = vmatpush.bf16.msra.mxu0 %v2014
          %2059 = vmatmul.bf16.gmra.mxu0 %v1905
          %v2060 = vpop.f32.mrf.mxu0
          %v2061 = vadd.f32 %v2048, %v2060
          %v2062 = vpop.f32.mrf.mxu0
          %2063 = vdwg.mxu0
          %v2064 = vlaneseq
          %v2065 = vand.u32 %v2064, 127
          %vm2066 = vcmp.lt.s32.totalorder %v2065, 100
          %v2067 = vsel %vm2066, %v1886, -inf
          %2068 = vmax.xlane.f32.xlu0 %v2067
          %v2069 = vpop.xlane.xlu0 %2068
          %v2070 = vsel %vm2066, %v1886, inf
          %2071 = vmin.xlane.f32.xlu0 %v2070
          %v2072 = vpop.xlane.xlu0 %2071
          %v2073 = vsub.f32 %v2069, %v2072
          %v2074 = vmax.f32 %v2073, 1e-12
          %v2075 = vrcp.pop %v2074
          %v2076 = vsub.f32 %v1886, %v2072
          %v2077 = vmul.f32 %v2076, 2.0
          %v2078 = vmul.f32 %v2077, %v2075
          %v2079 = vsub.f32 %v2078, 1.0
          %v2080 = vmul.f32 %v2079, %v2061
          %2081 = vst [vmem:[#allocation12] sm:$0xff] %v2080
        $region92: #{crystal_xas_forward.1} parent=63 // pred_fallthru
          _
        // Predicated region
        $region93: #{crystal_xas_forward.1} parent=63 // pred_check
          %p2082 = pneg %p280
        $region94: #{crystal_xas_forward.1} parent=63 // pred_check_branch
          %2084 = sbr.rel (%p2082) target = $region96
        $region95: #{crystal_xas_forward.1} parent=63 // pred_region
          %2086 = vsyncadd [#allocation5], 0
          %s2088 = sshll.u32 [#allocation12], 4
          %s2089 = int_to_ptr.vmem [resolvable:$true] %s2088
          %s2090 = sshll.u32 %s11, 4
          %s2091 = int_to_ptr.hbm [resolvable:$true] %s2090
          %2093 = dma.vmem_to_hbm [thread:$0]  %s2089, 128, %s2091, [#allocation5]
        $region96: #{crystal_xas_forward.1} parent=63 // pred_fallthru
          _
        // Predicated region
        $region97: #{crystal_xas_forward.1} parent=63 // pred_check
          %p2094 = pneg %p280
        $region98: #{crystal_xas_forward.1} parent=63 // pred_check_branch
          %2096 = sbr.rel (%p2094) target = $region100
        $region99: #{crystal_xas_forward.1} parent=63 // pred_region
          %2098 = dma.done [#allocation5], 128
        $region100: #{crystal_xas_forward.1} parent=63 // pred_fallthru
          _
      $region64: #{crystal_xas_forward.1} parent=5 // pred_fallthru
        _
      %p2099 = scmp.le.s32.totalorder 2, %s21
      // Predicated region
      $region101: #{crystal_xas_forward.1} parent=5 // pred_check
        %p2100 = pneg %p2099
      $region102: #{crystal_xas_forward.1} parent=5 // pred_check_branch
        %2102 = sbr.rel (%p2100) target = $region104
      $region103: #{crystal_xas_forward.1} parent=5 // pred_region
        %s2103 = ssub.s32 %s21, 2
      $region104: #{crystal_xas_forward.1} parent=5 // pred_fallthru
        _
    $region6: #{crystal_xas_forward.1} parent=1 // loop_footer
      %s25 = sadd.s32 1, %s21
    $region7: #{crystal_xas_forward.1} parent=1 // loop_footer_branch
      %20 = sbr.rel target = $region3
    $region8: #{crystal_xas_forward.1} parent=1 // loop_exit
      _
    %2104 = vsyncpa [#allocation4], 1
    %s2105 = scalar_lea.sflag [#allocation4], 1
    %2106 = vsyncpa %s2105, 1
    %2107 = vsyncpa [#allocation7], 1
    %2108 = vsyncpa [#allocation10], 1
    %2109 = vsyncpa [#allocation5], 1
    %s2110 = scalar_lea.sflag [#allocation5], 1
    %2111 = vsyncpa %s2110, 1

</llo_original>
